<compile_context>
chip_gen: v6e
topology: v6e:2x2x1
jax: 0.10.0
libtpu: 0.0.40
codegen_flags: <defaults>
</compile_context>

<pallas_src>
import jax
import jax.numpy as jnp
from jax.experimental import pallas as pl
from jax.experimental.pallas import tpu as pltpu

KH, KW, PAD = 5, 5, 2


def apply_bayar_constraint(w):
    """JAX equivalent of LHPF.reset_parameters() (pure, not in-place)."""
    center = w[:, :, 2, 2]                                  # [Cout, Cin]
    summed = w.sum(axis=(2, 3)) - center                    # sum of non-central taps
    w = w / summed[:, :, None, None]
    w = w.at[:, :, 2, 2].set(-1.0)
    return w


def lhpf_kernel(w_ref, x_ref, o_ref):
    # w_ref: SMEM (scalar-prefetch), flat [Cout*Cin*KH*KW] float32 taps
    # x_ref: VMEM, [Cin, TH + 2*PAD, W + 2*PAD]  (one padded row-window with halo)
    # o_ref: VMEM, [Cout + Cin, TH, W]           (conv channels, then input copy)
    Cin, _, _ = x_ref.shape
    Ctot, TH, W = o_ref.shape
    Cout = Ctot - Cin

    # 5x5 cross-correlation, shift-and-MAC on the VPU.
    # Each (ci, kh) row slab is loaded once from VMEM and reused for all
    # kw shifts and all Cout output channels (co is the innermost loop).
    accs = [jnp.zeros((TH, W), jnp.float32) for _ in range(Cout)]
    for ci in range(Cin):
        for kh in range(KH):
            row = x_ref[ci, kh:kh + TH, :]            # (TH, W + 2*PAD), one load
            for kw in range(KW):
                win = row[:, kw:kw + W]               # in-register lane shift
                for co in range(Cout):
                    tap = w_ref[((co * Cin + ci) * KH + kh) * KW + kw]
                    accs[co] = accs[co] + win * tap
    for co in range(Cout):
        o_ref[co, :, :] = accs[co].astype(o_ref.dtype)

    # torch.cat((x1, x), dim=1): single fused store of the center crop.
    o_ref[Cout:, :, :] = x_ref[:, PAD:PAD + TH, PAD:PAD + W].astype(o_ref.dtype)


def _pick_tile_h(H, Cin, Ctot, W, budget_bytes=6 << 20):
    """Largest row-tile (multiple of 8, divides H) whose block fits the budget."""
    Wp = W + 2 * PAD
    candidates = [th for th in range(8, min(H, 512) + 1, 8) if H % th == 0]
    if not candidates:
        return H                                     # single full-height block
    fitting = [th for th in candidates
               if Cin * (th + 2 * PAD) * Wp * 4 + Ctot * th * W * 4 <= budget_bytes]
    return max(fitting) if fitting else min(candidates)


def lhpf_forward(x, weight, tile_h=None):
    """x: [N, Cin, H, W] float32, weight: [Cout, Cin, 5, 5] float32."""
    N, Cin, H, W = x.shape
    Cout = weight.shape[0]
    Ctot = Cout + Cin
    Wp = W + 2 * PAD

    w_c = apply_bayar_constraint(weight)
    w_flat = w_c.reshape(-1).astype(jnp.float32)

    TH = tile_h if tile_h is not None else _pick_tile_h(H, Cin, Ctot, W)
    assert H % TH == 0, "row tile must divide H"
    assert TH == H or TH % 8 == 0, "row tile must be a multiple of 8 (or full H)"
    nt = H // TH

    # Overlapping row windows with a 2-row halo on each side (and zero padding
    # for W), so each grid step sees exactly the rows it needs.
    xpad = jnp.pad(x, ((0, 0), (0, 0), (PAD, PAD), (PAD, PAD)))
    windows = jnp.stack(
        [xpad[:, :, t * TH: t * TH + TH + 2 * PAD, :] for t in range(nt)],
        axis=1)                                      # (N, nt, Cin, TH+4, Wp)

    # Per-step VMEM accounting (double-buffered in/out), kept well under the
    # v7x 64 MiB physical VMEM; never request more than 48 MiB.
    in_block = Cin * (TH + 2 * PAD) * Wp * 4
    out_block = Ctot * TH * W * 4
    vmem_limit = int(min(max(4 * (in_block + out_block), 16 << 20), 48 << 20))

    grid_spec = pltpu.PrefetchScalarGridSpec(
        num_scalar_prefetch=1,                       # weight taps -> SMEM
        grid=(N, nt),
        in_specs=[
            pl.BlockSpec((None, None, Cin, TH + 2 * PAD, Wp),
                         lambda n, t, w: (n, t, 0, 0, 0)),
        ],
        out_specs=pl.BlockSpec((None, Ctot, TH, W),
                               lambda n, t, w: (n, 0, t, 0)),
    )

    return pl.pallas_call(
        lhpf_kernel,
        out_shape=jax.ShapeDtypeStruct((N, Ctot, H, W), x.dtype),
        grid_spec=grid_spec,
        compiler_params=pltpu.CompilerParams(
            dimension_semantics=("parallel", "parallel"),
            vmem_limit_bytes=vmem_limit),
    )(w_flat, windows)


def lhpf_reference(x, weight):
    """Pure-JAX reference for correctness checking."""
    w_c = apply_bayar_constraint(weight)
    x1 = jax.lax.conv_general_dilated(
        x, w_c, window_strides=(1, 1),
        padding=[(PAD, PAD), (PAD, PAD)],
        dimension_numbers=("NCHW", "OIHW", "NCHW"))
    return jnp.concatenate([x1, x], axis=1)


if __name__ == "__main__":
    key = jax.random.PRNGKey(0)
    kx, kw = jax.random.split(key)

    N, Cin, H, W = 2, 3, 16, 16          # LHPF forward implies 3 input channels
    Cout = 3

    x = jax.random.normal(kx, (N, Cin, H, W), dtype=jnp.float32)
    weight = jax.random.normal(kw, (Cout, Cin, KH, KW), dtype=jnp.float32)

    # tile_h=8 forces the multi-row-tile + halo path even at this small size.
    out = lhpf_forward(x, weight, tile_h=8)
    out = jax.block_until_ready(out)

    ref = lhpf_reference(x, weight)
    assert out.shape == (N, Cout + Cin, H, W)
    assert jnp.allclose(out, ref, rtol=1e-5, atol=1e-5), "mismatch vs JAX reference"

    print("KERNEL_OK")
</pallas_src>

<mosaic_0001>
module attributes {stable_mosaic.version = 11 : i64} {
  func.func @lhpf_kernel(%arg0: i32, %arg1: i32, %arg2: memref<225xf32, #tpu.memory_space<smem>>, %arg3: memref<1x1x3x12x20xf32, #tpu.memory_space<vmem>>, %arg4: memref<1x6x8x16xf32, #tpu.memory_space<vmem>>) attributes {dimension_semantics = [#tpu.dimension_semantics<parallel>, #tpu.dimension_semantics<parallel>], iteration_bounds = array<i64: 2, 2>, scalar_prefetch = 1 : i64, scratch_operands = 0 : i64, tpu.core_type = #tpu.core_type<tc>, window_params = [{transform_indices = @transform_0, window_bounds = array<i64: 1, 1, 3, 12, 20>}, {transform_indices = @transform_1, window_bounds = array<i64: 1, 6, 8, 16>}]} {
    %cst = arith.constant 0.000000e+00 : f32
    %0 = vector.broadcast %cst : f32 to vector<8x16xf32>
    %cst_0 = arith.constant 0.000000e+00 : f32
    %1 = vector.broadcast %cst_0 : f32 to vector<8x16xf32>
    %cst_1 = arith.constant 0.000000e+00 : f32
    %2 = vector.broadcast %cst_1 : f32 to vector<8x16xf32>
    %c0 = arith.constant 0 : index
    %c0_2 = arith.constant 0 : index
    %c0_3 = arith.constant 0 : index
    %c0_4 = arith.constant 0 : index
    %c0_5 = arith.constant 0 : index
    %3 = vector.load %arg3[%c0, %c0_2, %c0_3, %c0_4, %c0_5] : memref<1x1x3x12x20xf32, #tpu.memory_space<vmem>>, vector<1x1x1x8x20xf32>
    %4 = vector.shape_cast %3 : vector<1x1x1x8x20xf32> to vector<8x20xf32>
    %5 = vector.extract_strided_slice %4 {offsets = [0, 0], sizes = [8, 16], strides = [1, 1]} : vector<8x20xf32> to vector<8x16xf32>
    %c0_6 = arith.constant 0 : index
    %6 = memref.load %arg2[%c0_6] : memref<225xf32, #tpu.memory_space<smem>>
    %7 = vector.broadcast %6 : f32 to vector<8x16xf32>
    %8 = arith.mulf %5, %7 : vector<8x16xf32>
    %9 = arith.addf %0, %8 : vector<8x16xf32>
    %c75 = arith.constant 75 : index
    %10 = memref.load %arg2[%c75] : memref<225xf32, #tpu.memory_space<smem>>
    %11 = vector.broadcast %10 : f32 to vector<8x16xf32>
    %12 = arith.mulf %5, %11 : vector<8x16xf32>
    %13 = arith.addf %1, %12 : vector<8x16xf32>
    %c150 = arith.constant 150 : index
    %14 = memref.load %arg2[%c150] : memref<225xf32, #tpu.memory_space<smem>>
    %15 = vector.broadcast %14 : f32 to vector<8x16xf32>
    %16 = arith.mulf %5, %15 : vector<8x16xf32>
    %17 = arith.addf %2, %16 : vector<8x16xf32>
    %18 = vector.extract_strided_slice %4 {offsets = [0, 1], sizes = [8, 16], strides = [1, 1]} : vector<8x20xf32> to vector<8x16xf32>
    %c1 = arith.constant 1 : index
    %19 = memref.load %arg2[%c1] : memref<225xf32, #tpu.memory_space<smem>>
    %20 = vector.broadcast %19 : f32 to vector<8x16xf32>
    %21 = arith.mulf %18, %20 : vector<8x16xf32>
    %22 = arith.addf %9, %21 : vector<8x16xf32>
    %c76 = arith.constant 76 : index
    %23 = memref.load %arg2[%c76] : memref<225xf32, #tpu.memory_space<smem>>
    %24 = vector.broadcast %23 : f32 to vector<8x16xf32>
    %25 = arith.mulf %18, %24 : vector<8x16xf32>
    %26 = arith.addf %13, %25 : vector<8x16xf32>
    %c151 = arith.constant 151 : index
    %27 = memref.load %arg2[%c151] : memref<225xf32, #tpu.memory_space<smem>>
    %28 = vector.broadcast %27 : f32 to vector<8x16xf32>
    %29 = arith.mulf %18, %28 : vector<8x16xf32>
    %30 = arith.addf %17, %29 : vector<8x16xf32>
    %31 = vector.extract_strided_slice %4 {offsets = [0, 2], sizes = [8, 16], strides = [1, 1]} : vector<8x20xf32> to vector<8x16xf32>
    %c2 = arith.constant 2 : index
    %32 = memref.load %arg2[%c2] : memref<225xf32, #tpu.memory_space<smem>>
    %33 = vector.broadcast %32 : f32 to vector<8x16xf32>
    %34 = arith.mulf %31, %33 : vector<8x16xf32>
    %35 = arith.addf %22, %34 : vector<8x16xf32>
    %c77 = arith.constant 77 : index
    %36 = memref.load %arg2[%c77] : memref<225xf32, #tpu.memory_space<smem>>
    %37 = vector.broadcast %36 : f32 to vector<8x16xf32>
    %38 = arith.mulf %31, %37 : vector<8x16xf32>
    %39 = arith.addf %26, %38 : vector<8x16xf32>
    %c152 = arith.constant 152 : index
    %40 = memref.load %arg2[%c152] : memref<225xf32, #tpu.memory_space<smem>>
    %41 = vector.broadcast %40 : f32 to vector<8x16xf32>
    %42 = arith.mulf %31, %41 : vector<8x16xf32>
    %43 = arith.addf %30, %42 : vector<8x16xf32>
    %44 = vector.extract_strided_slice %4 {offsets = [0, 3], sizes = [8, 16], strides = [1, 1]} : vector<8x20xf32> to vector<8x16xf32>
    %c3 = arith.constant 3 : index
    %45 = memref.load %arg2[%c3] : memref<225xf32, #tpu.memory_space<smem>>
    %46 = vector.broadcast %45 : f32 to vector<8x16xf32>
    %47 = arith.mulf %44, %46 : vector<8x16xf32>
    %48 = arith.addf %35, %47 : vector<8x16xf32>
    %c78 = arith.constant 78 : index
    %49 = memref.load %arg2[%c78] : memref<225xf32, #tpu.memory_space<smem>>
    %50 = vector.broadcast %49 : f32 to vector<8x16xf32>
    %51 = arith.mulf %44, %50 : vector<8x16xf32>
    %52 = arith.addf %39, %51 : vector<8x16xf32>
    %c153 = arith.constant 153 : index
    %53 = memref.load %arg2[%c153] : memref<225xf32, #tpu.memory_space<smem>>
    %54 = vector.broadcast %53 : f32 to vector<8x16xf32>
    %55 = arith.mulf %44, %54 : vector<8x16xf32>
    %56 = arith.addf %43, %55 : vector<8x16xf32>
    %57 = vector.extract_strided_slice %4 {offsets = [0, 4], sizes = [8, 16], strides = [1, 1]} : vector<8x20xf32> to vector<8x16xf32>
    %c4 = arith.constant 4 : index
    %58 = memref.load %arg2[%c4] : memref<225xf32, #tpu.memory_space<smem>>
    %59 = vector.broadcast %58 : f32 to vector<8x16xf32>
    %60 = arith.mulf %57, %59 : vector<8x16xf32>
    %61 = arith.addf %48, %60 : vector<8x16xf32>
    %c79 = arith.constant 79 : index
    %62 = memref.load %arg2[%c79] : memref<225xf32, #tpu.memory_space<smem>>
    %63 = vector.broadcast %62 : f32 to vector<8x16xf32>
    %64 = arith.mulf %57, %63 : vector<8x16xf32>
    %65 = arith.addf %52, %64 : vector<8x16xf32>
    %c154 = arith.constant 154 : index
    %66 = memref.load %arg2[%c154] : memref<225xf32, #tpu.memory_space<smem>>
    %67 = vector.broadcast %66 : f32 to vector<8x16xf32>
    %68 = arith.mulf %57, %67 : vector<8x16xf32>
    %69 = arith.addf %56, %68 : vector<8x16xf32>
    %c0_7 = arith.constant 0 : index
    %c0_8 = arith.constant 0 : index
    %c0_9 = arith.constant 0 : index
    %c1_10 = arith.constant 1 : index
    %c0_11 = arith.constant 0 : index
    %70 = vector.load %arg3[%c0_7, %c0_8, %c0_9, %c1_10, %c0_11] : memref<1x1x3x12x20xf32, #tpu.memory_space<vmem>>, vector<1x1x1x8x20xf32>
    %71 = vector.shape_cast %70 : vector<1x1x1x8x20xf32> to vector<8x20xf32>
    %72 = vector.extract_strided_slice %71 {offsets = [0, 0], sizes = [8, 16], strides = [1, 1]} : vector<8x20xf32> to vector<8x16xf32>
    %c5 = arith.constant 5 : index
    %73 = memref.load %arg2[%c5] : memref<225xf32, #tpu.memory_space<smem>>
    %74 = vector.broadcast %73 : f32 to vector<8x16xf32>
    %75 = arith.mulf %72, %74 : vector<8x16xf32>
    %76 = arith.addf %61, %75 : vector<8x16xf32>
    %c80 = arith.constant 80 : index
    %77 = memref.load %arg2[%c80] : memref<225xf32, #tpu.memory_space<smem>>
    %78 = vector.broadcast %77 : f32 to vector<8x16xf32>
    %79 = arith.mulf %72, %78 : vector<8x16xf32>
    %80 = arith.addf %65, %79 : vector<8x16xf32>
    %c155 = arith.constant 155 : index
    %81 = memref.load %arg2[%c155] : memref<225xf32, #tpu.memory_space<smem>>
    %82 = vector.broadcast %81 : f32 to vector<8x16xf32>
    %83 = arith.mulf %72, %82 : vector<8x16xf32>
    %84 = arith.addf %69, %83 : vector<8x16xf32>
    %85 = vector.extract_strided_slice %71 {offsets = [0, 1], sizes = [8, 16], strides = [1, 1]} : vector<8x20xf32> to vector<8x16xf32>
    %c6 = arith.constant 6 : index
    %86 = memref.load %arg2[%c6] : memref<225xf32, #tpu.memory_space<smem>>
    %87 = vector.broadcast %86 : f32 to vector<8x16xf32>
    %88 = arith.mulf %85, %87 : vector<8x16xf32>
    %89 = arith.addf %76, %88 : vector<8x16xf32>
    %c81 = arith.constant 81 : index
    %90 = memref.load %arg2[%c81] : memref<225xf32, #tpu.memory_space<smem>>
    %91 = vector.broadcast %90 : f32 to vector<8x16xf32>
    %92 = arith.mulf %85, %91 : vector<8x16xf32>
    %93 = arith.addf %80, %92 : vector<8x16xf32>
    %c156 = arith.constant 156 : index
    %94 = memref.load %arg2[%c156] : memref<225xf32, #tpu.memory_space<smem>>
    %95 = vector.broadcast %94 : f32 to vector<8x16xf32>
    %96 = arith.mulf %85, %95 : vector<8x16xf32>
    %97 = arith.addf %84, %96 : vector<8x16xf32>
    %98 = vector.extract_strided_slice %71 {offsets = [0, 2], sizes = [8, 16], strides = [1, 1]} : vector<8x20xf32> to vector<8x16xf32>
    %c7 = arith.constant 7 : index
    %99 = memref.load %arg2[%c7] : memref<225xf32, #tpu.memory_space<smem>>
    %100 = vector.broadcast %99 : f32 to vector<8x16xf32>
    %101 = arith.mulf %98, %100 : vector<8x16xf32>
    %102 = arith.addf %89, %101 : vector<8x16xf32>
    %c82 = arith.constant 82 : index
    %103 = memref.load %arg2[%c82] : memref<225xf32, #tpu.memory_space<smem>>
    %104 = vector.broadcast %103 : f32 to vector<8x16xf32>
    %105 = arith.mulf %98, %104 : vector<8x16xf32>
    %106 = arith.addf %93, %105 : vector<8x16xf32>
    %c157 = arith.constant 157 : index
    %107 = memref.load %arg2[%c157] : memref<225xf32, #tpu.memory_space<smem>>
    %108 = vector.broadcast %107 : f32 to vector<8x16xf32>
    %109 = arith.mulf %98, %108 : vector<8x16xf32>
    %110 = arith.addf %97, %109 : vector<8x16xf32>
    %111 = vector.extract_strided_slice %71 {offsets = [0, 3], sizes = [8, 16], strides = [1, 1]} : vector<8x20xf32> to vector<8x16xf32>
    %c8 = arith.constant 8 : index
    %112 = memref.load %arg2[%c8] : memref<225xf32, #tpu.memory_space<smem>>
    %113 = vector.broadcast %112 : f32 to vector<8x16xf32>
    %114 = arith.mulf %111, %113 : vector<8x16xf32>
    %115 = arith.addf %102, %114 : vector<8x16xf32>
    %c83 = arith.constant 83 : index
    %116 = memref.load %arg2[%c83] : memref<225xf32, #tpu.memory_space<smem>>
    %117 = vector.broadcast %116 : f32 to vector<8x16xf32>
    %118 = arith.mulf %111, %117 : vector<8x16xf32>
    %119 = arith.addf %106, %118 : vector<8x16xf32>
    %c158 = arith.constant 158 : index
    %120 = memref.load %arg2[%c158] : memref<225xf32, #tpu.memory_space<smem>>
    %121 = vector.broadcast %120 : f32 to vector<8x16xf32>
    %122 = arith.mulf %111, %121 : vector<8x16xf32>
    %123 = arith.addf %110, %122 : vector<8x16xf32>
    %124 = vector.extract_strided_slice %71 {offsets = [0, 4], sizes = [8, 16], strides = [1, 1]} : vector<8x20xf32> to vector<8x16xf32>
    %c9 = arith.constant 9 : index
    %125 = memref.load %arg2[%c9] : memref<225xf32, #tpu.memory_space<smem>>
    %126 = vector.broadcast %125 : f32 to vector<8x16xf32>
    %127 = arith.mulf %124, %126 : vector<8x16xf32>
    %128 = arith.addf %115, %127 : vector<8x16xf32>
    %c84 = arith.constant 84 : index
    %129 = memref.load %arg2[%c84] : memref<225xf32, #tpu.memory_space<smem>>
    %130 = vector.broadcast %129 : f32 to vector<8x16xf32>
    %131 = arith.mulf %124, %130 : vector<8x16xf32>
    %132 = arith.addf %119, %131 : vector<8x16xf32>
    %c159 = arith.constant 159 : index
    %133 = memref.load %arg2[%c159] : memref<225xf32, #tpu.memory_space<smem>>
    %134 = vector.broadcast %133 : f32 to vector<8x16xf32>
    %135 = arith.mulf %124, %134 : vector<8x16xf32>
    %136 = arith.addf %123, %135 : vector<8x16xf32>
    %c0_12 = arith.constant 0 : index
    %c0_13 = arith.constant 0 : index
    %c0_14 = arith.constant 0 : index
    %c2_15 = arith.constant 2 : index
    %c0_16 = arith.constant 0 : index
    %137 = vector.load %arg3[%c0_12, %c0_13, %c0_14, %c2_15, %c0_16] : memref<1x1x3x12x20xf32, #tpu.memory_space<vmem>>, vector<1x1x1x8x20xf32>
    %138 = vector.shape_cast %137 : vector<1x1x1x8x20xf32> to vector<8x20xf32>
    %139 = vector.extract_strided_slice %138 {offsets = [0, 0], sizes = [8, 16], strides = [1, 1]} : vector<8x20xf32> to vector<8x16xf32>
    %c10 = arith.constant 10 : index
    %140 = memref.load %arg2[%c10] : memref<225xf32, #tpu.memory_space<smem>>
    %141 = vector.broadcast %140 : f32 to vector<8x16xf32>
    %142 = arith.mulf %139, %141 : vector<8x16xf32>
    %143 = arith.addf %128, %142 : vector<8x16xf32>
    %c85 = arith.constant 85 : index
    %144 = memref.load %arg2[%c85] : memref<225xf32, #tpu.memory_space<smem>>
    %145 = vector.broadcast %144 : f32 to vector<8x16xf32>
    %146 = arith.mulf %139, %145 : vector<8x16xf32>
    %147 = arith.addf %132, %146 : vector<8x16xf32>
    %c160 = arith.constant 160 : index
    %148 = memref.load %arg2[%c160] : memref<225xf32, #tpu.memory_space<smem>>
    %149 = vector.broadcast %148 : f32 to vector<8x16xf32>
    %150 = arith.mulf %139, %149 : vector<8x16xf32>
    %151 = arith.addf %136, %150 : vector<8x16xf32>
    %152 = vector.extract_strided_slice %138 {offsets = [0, 1], sizes = [8, 16], strides = [1, 1]} : vector<8x20xf32> to vector<8x16xf32>
    %c11 = arith.constant 11 : index
    %153 = memref.load %arg2[%c11] : memref<225xf32, #tpu.memory_space<smem>>
    %154 = vector.broadcast %153 : f32 to vector<8x16xf32>
    %155 = arith.mulf %152, %154 : vector<8x16xf32>
    %156 = arith.addf %143, %155 : vector<8x16xf32>
    %c86 = arith.constant 86 : index
    %157 = memref.load %arg2[%c86] : memref<225xf32, #tpu.memory_space<smem>>
    %158 = vector.broadcast %157 : f32 to vector<8x16xf32>
    %159 = arith.mulf %152, %158 : vector<8x16xf32>
    %160 = arith.addf %147, %159 : vector<8x16xf32>
    %c161 = arith.constant 161 : index
    %161 = memref.load %arg2[%c161] : memref<225xf32, #tpu.memory_space<smem>>
    %162 = vector.broadcast %161 : f32 to vector<8x16xf32>
    %163 = arith.mulf %152, %162 : vector<8x16xf32>
    %164 = arith.addf %151, %163 : vector<8x16xf32>
    %165 = vector.extract_strided_slice %138 {offsets = [0, 2], sizes = [8, 16], strides = [1, 1]} : vector<8x20xf32> to vector<8x16xf32>
    %c12 = arith.constant 12 : index
    %166 = memref.load %arg2[%c12] : memref<225xf32, #tpu.memory_space<smem>>
    %167 = vector.broadcast %166 : f32 to vector<8x16xf32>
    %168 = arith.mulf %165, %167 : vector<8x16xf32>
    %169 = arith.addf %156, %168 : vector<8x16xf32>
    %c87 = arith.constant 87 : index
    %170 = memref.load %arg2[%c87] : memref<225xf32, #tpu.memory_space<smem>>
    %171 = vector.broadcast %170 : f32 to vector<8x16xf32>
    %172 = arith.mulf %165, %171 : vector<8x16xf32>
    %173 = arith.addf %160, %172 : vector<8x16xf32>
    %c162 = arith.constant 162 : index
    %174 = memref.load %arg2[%c162] : memref<225xf32, #tpu.memory_space<smem>>
    %175 = vector.broadcast %174 : f32 to vector<8x16xf32>
    %176 = arith.mulf %165, %175 : vector<8x16xf32>
    %177 = arith.addf %164, %176 : vector<8x16xf32>
    %178 = vector.extract_strided_slice %138 {offsets = [0, 3], sizes = [8, 16], strides = [1, 1]} : vector<8x20xf32> to vector<8x16xf32>
    %c13 = arith.constant 13 : index
    %179 = memref.load %arg2[%c13] : memref<225xf32, #tpu.memory_space<smem>>
    %180 = vector.broadcast %179 : f32 to vector<8x16xf32>
    %181 = arith.mulf %178, %180 : vector<8x16xf32>
    %182 = arith.addf %169, %181 : vector<8x16xf32>
    %c88 = arith.constant 88 : index
    %183 = memref.load %arg2[%c88] : memref<225xf32, #tpu.memory_space<smem>>
    %184 = vector.broadcast %183 : f32 to vector<8x16xf32>
    %185 = arith.mulf %178, %184 : vector<8x16xf32>
    %186 = arith.addf %173, %185 : vector<8x16xf32>
    %c163 = arith.constant 163 : index
    %187 = memref.load %arg2[%c163] : memref<225xf32, #tpu.memory_space<smem>>
    %188 = vector.broadcast %187 : f32 to vector<8x16xf32>
    %189 = arith.mulf %178, %188 : vector<8x16xf32>
    %190 = arith.addf %177, %189 : vector<8x16xf32>
    %191 = vector.extract_strided_slice %138 {offsets = [0, 4], sizes = [8, 16], strides = [1, 1]} : vector<8x20xf32> to vector<8x16xf32>
    %c14 = arith.constant 14 : index
    %192 = memref.load %arg2[%c14] : memref<225xf32, #tpu.memory_space<smem>>
    %193 = vector.broadcast %192 : f32 to vector<8x16xf32>
    %194 = arith.mulf %191, %193 : vector<8x16xf32>
    %195 = arith.addf %182, %194 : vector<8x16xf32>
    %c89 = arith.constant 89 : index
    %196 = memref.load %arg2[%c89] : memref<225xf32, #tpu.memory_space<smem>>
    %197 = vector.broadcast %196 : f32 to vector<8x16xf32>
    %198 = arith.mulf %191, %197 : vector<8x16xf32>
    %199 = arith.addf %186, %198 : vector<8x16xf32>
    %c164 = arith.constant 164 : index
    %200 = memref.load %arg2[%c164] : memref<225xf32, #tpu.memory_space<smem>>
    %201 = vector.broadcast %200 : f32 to vector<8x16xf32>
    %202 = arith.mulf %191, %201 : vector<8x16xf32>
    %203 = arith.addf %190, %202 : vector<8x16xf32>
    %c0_17 = arith.constant 0 : index
    %c0_18 = arith.constant 0 : index
    %c0_19 = arith.constant 0 : index
    %c3_20 = arith.constant 3 : index
    %c0_21 = arith.constant 0 : index
    %204 = vector.load %arg3[%c0_17, %c0_18, %c0_19, %c3_20, %c0_21] : memref<1x1x3x12x20xf32, #tpu.memory_space<vmem>>, vector<1x1x1x8x20xf32>
    %205 = vector.shape_cast %204 : vector<1x1x1x8x20xf32> to vector<8x20xf32>
    %206 = vector.extract_strided_slice %205 {offsets = [0, 0], sizes = [8, 16], strides = [1, 1]} : vector<8x20xf32> to vector<8x16xf32>
    %c15 = arith.constant 15 : index
    %207 = memref.load %arg2[%c15] : memref<225xf32, #tpu.memory_space<smem>>
    %208 = vector.broadcast %207 : f32 to vector<8x16xf32>
    %209 = arith.mulf %206, %208 : vector<8x16xf32>
    %210 = arith.addf %195, %209 : vector<8x16xf32>
    %c90 = arith.constant 90 : index
    %211 = memref.load %arg2[%c90] : memref<225xf32, #tpu.memory_space<smem>>
    %212 = vector.broadcast %211 : f32 to vector<8x16xf32>
    %213 = arith.mulf %206, %212 : vector<8x16xf32>
    %214 = arith.addf %199, %213 : vector<8x16xf32>
    %c165 = arith.constant 165 : index
    %215 = memref.load %arg2[%c165] : memref<225xf32, #tpu.memory_space<smem>>
    %216 = vector.broadcast %215 : f32 to vector<8x16xf32>
    %217 = arith.mulf %206, %216 : vector<8x16xf32>
    %218 = arith.addf %203, %217 : vector<8x16xf32>
    %219 = vector.extract_strided_slice %205 {offsets = [0, 1], sizes = [8, 16], strides = [1, 1]} : vector<8x20xf32> to vector<8x16xf32>
    %c16 = arith.constant 16 : index
    %220 = memref.load %arg2[%c16] : memref<225xf32, #tpu.memory_space<smem>>
    %221 = vector.broadcast %220 : f32 to vector<8x16xf32>
    %222 = arith.mulf %219, %221 : vector<8x16xf32>
    %223 = arith.addf %210, %222 : vector<8x16xf32>
    %c91 = arith.constant 91 : index
    %224 = memref.load %arg2[%c91] : memref<225xf32, #tpu.memory_space<smem>>
    %225 = vector.broadcast %224 : f32 to vector<8x16xf32>
    %226 = arith.mulf %219, %225 : vector<8x16xf32>
    %227 = arith.addf %214, %226 : vector<8x16xf32>
    %c166 = arith.constant 166 : index
    %228 = memref.load %arg2[%c166] : memref<225xf32, #tpu.memory_space<smem>>
    %229 = vector.broadcast %228 : f32 to vector<8x16xf32>
    %230 = arith.mulf %219, %229 : vector<8x16xf32>
    %231 = arith.addf %218, %230 : vector<8x16xf32>
    %232 = vector.extract_strided_slice %205 {offsets = [0, 2], sizes = [8, 16], strides = [1, 1]} : vector<8x20xf32> to vector<8x16xf32>
    %c17 = arith.constant 17 : index
    %233 = memref.load %arg2[%c17] : memref<225xf32, #tpu.memory_space<smem>>
    %234 = vector.broadcast %233 : f32 to vector<8x16xf32>
    %235 = arith.mulf %232, %234 : vector<8x16xf32>
    %236 = arith.addf %223, %235 : vector<8x16xf32>
    %c92 = arith.constant 92 : index
    %237 = memref.load %arg2[%c92] : memref<225xf32, #tpu.memory_space<smem>>
    %238 = vector.broadcast %237 : f32 to vector<8x16xf32>
    %239 = arith.mulf %232, %238 : vector<8x16xf32>
    %240 = arith.addf %227, %239 : vector<8x16xf32>
    %c167 = arith.constant 167 : index
    %241 = memref.load %arg2[%c167] : memref<225xf32, #tpu.memory_space<smem>>
    %242 = vector.broadcast %241 : f32 to vector<8x16xf32>
    %243 = arith.mulf %232, %242 : vector<8x16xf32>
    %244 = arith.addf %231, %243 : vector<8x16xf32>
    %245 = vector.extract_strided_slice %205 {offsets = [0, 3], sizes = [8, 16], strides = [1, 1]} : vector<8x20xf32> to vector<8x16xf32>
    %c18 = arith.constant 18 : index
    %246 = memref.load %arg2[%c18] : memref<225xf32, #tpu.memory_space<smem>>
    %247 = vector.broadcast %246 : f32 to vector<8x16xf32>
    %248 = arith.mulf %245, %247 : vector<8x16xf32>
    %249 = arith.addf %236, %248 : vector<8x16xf32>
    %c93 = arith.constant 93 : index
    %250 = memref.load %arg2[%c93] : memref<225xf32, #tpu.memory_space<smem>>
    %251 = vector.broadcast %250 : f32 to vector<8x16xf32>
    %252 = arith.mulf %245, %251 : vector<8x16xf32>
    %253 = arith.addf %240, %252 : vector<8x16xf32>
    %c168 = arith.constant 168 : index
    %254 = memref.load %arg2[%c168] : memref<225xf32, #tpu.memory_space<smem>>
    %255 = vector.broadcast %254 : f32 to vector<8x16xf32>
    %256 = arith.mulf %245, %255 : vector<8x16xf32>
    %257 = arith.addf %244, %256 : vector<8x16xf32>
    %258 = vector.extract_strided_slice %205 {offsets = [0, 4], sizes = [8, 16], strides = [1, 1]} : vector<8x20xf32> to vector<8x16xf32>
    %c19 = arith.constant 19 : index
    %259 = memref.load %arg2[%c19] : memref<225xf32, #tpu.memory_space<smem>>
    %260 = vector.broadcast %259 : f32 to vector<8x16xf32>
    %261 = arith.mulf %258, %260 : vector<8x16xf32>
    %262 = arith.addf %249, %261 : vector<8x16xf32>
    %c94 = arith.constant 94 : index
    %263 = memref.load %arg2[%c94] : memref<225xf32, #tpu.memory_space<smem>>
    %264 = vector.broadcast %263 : f32 to vector<8x16xf32>
    %265 = arith.mulf %258, %264 : vector<8x16xf32>
    %266 = arith.addf %253, %265 : vector<8x16xf32>
    %c169 = arith.constant 169 : index
    %267 = memref.load %arg2[%c169] : memref<225xf32, #tpu.memory_space<smem>>
    %268 = vector.broadcast %267 : f32 to vector<8x16xf32>
    %269 = arith.mulf %258, %268 : vector<8x16xf32>
    %270 = arith.addf %257, %269 : vector<8x16xf32>
    %c0_22 = arith.constant 0 : index
    %c0_23 = arith.constant 0 : index
    %c0_24 = arith.constant 0 : index
    %c4_25 = arith.constant 4 : index
    %c0_26 = arith.constant 0 : index
    %271 = vector.load %arg3[%c0_22, %c0_23, %c0_24, %c4_25, %c0_26] : memref<1x1x3x12x20xf32, #tpu.memory_space<vmem>>, vector<1x1x1x8x20xf32>
    %272 = vector.shape_cast %271 : vector<1x1x1x8x20xf32> to vector<8x20xf32>
    %273 = vector.extract_strided_slice %272 {offsets = [0, 0], sizes = [8, 16], strides = [1, 1]} : vector<8x20xf32> to vector<8x16xf32>
    %c20 = arith.constant 20 : index
    %274 = memref.load %arg2[%c20] : memref<225xf32, #tpu.memory_space<smem>>
    %275 = vector.broadcast %274 : f32 to vector<8x16xf32>
    %276 = arith.mulf %273, %275 : vector<8x16xf32>
    %277 = arith.addf %262, %276 : vector<8x16xf32>
    %c95 = arith.constant 95 : index
    %278 = memref.load %arg2[%c95] : memref<225xf32, #tpu.memory_space<smem>>
    %279 = vector.broadcast %278 : f32 to vector<8x16xf32>
    %280 = arith.mulf %273, %279 : vector<8x16xf32>
    %281 = arith.addf %266, %280 : vector<8x16xf32>
    %c170 = arith.constant 170 : index
    %282 = memref.load %arg2[%c170] : memref<225xf32, #tpu.memory_space<smem>>
    %283 = vector.broadcast %282 : f32 to vector<8x16xf32>
    %284 = arith.mulf %273, %283 : vector<8x16xf32>
    %285 = arith.addf %270, %284 : vector<8x16xf32>
    %286 = vector.extract_strided_slice %272 {offsets = [0, 1], sizes = [8, 16], strides = [1, 1]} : vector<8x20xf32> to vector<8x16xf32>
    %c21 = arith.constant 21 : index
    %287 = memref.load %arg2[%c21] : memref<225xf32, #tpu.memory_space<smem>>
    %288 = vector.broadcast %287 : f32 to vector<8x16xf32>
    %289 = arith.mulf %286, %288 : vector<8x16xf32>
    %290 = arith.addf %277, %289 : vector<8x16xf32>
    %c96 = arith.constant 96 : index
    %291 = memref.load %arg2[%c96] : memref<225xf32, #tpu.memory_space<smem>>
    %292 = vector.broadcast %291 : f32 to vector<8x16xf32>
    %293 = arith.mulf %286, %292 : vector<8x16xf32>
    %294 = arith.addf %281, %293 : vector<8x16xf32>
    %c171 = arith.constant 171 : index
    %295 = memref.load %arg2[%c171] : memref<225xf32, #tpu.memory_space<smem>>
    %296 = vector.broadcast %295 : f32 to vector<8x16xf32>
    %297 = arith.mulf %286, %296 : vector<8x16xf32>
    %298 = arith.addf %285, %297 : vector<8x16xf32>
    %299 = vector.extract_strided_slice %272 {offsets = [0, 2], sizes = [8, 16], strides = [1, 1]} : vector<8x20xf32> to vector<8x16xf32>
    %c22 = arith.constant 22 : index
    %300 = memref.load %arg2[%c22] : memref<225xf32, #tpu.memory_space<smem>>
    %301 = vector.broadcast %300 : f32 to vector<8x16xf32>
    %302 = arith.mulf %299, %301 : vector<8x16xf32>
    %303 = arith.addf %290, %302 : vector<8x16xf32>
    %c97 = arith.constant 97 : index
    %304 = memref.load %arg2[%c97] : memref<225xf32, #tpu.memory_space<smem>>
    %305 = vector.broadcast %304 : f32 to vector<8x16xf32>
    %306 = arith.mulf %299, %305 : vector<8x16xf32>
    %307 = arith.addf %294, %306 : vector<8x16xf32>
    %c172 = arith.constant 172 : index
    %308 = memref.load %arg2[%c172] : memref<225xf32, #tpu.memory_space<smem>>
    %309 = vector.broadcast %308 : f32 to vector<8x16xf32>
    %310 = arith.mulf %299, %309 : vector<8x16xf32>
    %311 = arith.addf %298, %310 : vector<8x16xf32>
    %312 = vector.extract_strided_slice %272 {offsets = [0, 3], sizes = [8, 16], strides = [1, 1]} : vector<8x20xf32> to vector<8x16xf32>
    %c23 = arith.constant 23 : index
    %313 = memref.load %arg2[%c23] : memref<225xf32, #tpu.memory_space<smem>>
    %314 = vector.broadcast %313 : f32 to vector<8x16xf32>
    %315 = arith.mulf %312, %314 : vector<8x16xf32>
    %316 = arith.addf %303, %315 : vector<8x16xf32>
    %c98 = arith.constant 98 : index
    %317 = memref.load %arg2[%c98] : memref<225xf32, #tpu.memory_space<smem>>
    %318 = vector.broadcast %317 : f32 to vector<8x16xf32>
    %319 = arith.mulf %312, %318 : vector<8x16xf32>
    %320 = arith.addf %307, %319 : vector<8x16xf32>
    %c173 = arith.constant 173 : index
    %321 = memref.load %arg2[%c173] : memref<225xf32, #tpu.memory_space<smem>>
    %322 = vector.broadcast %321 : f32 to vector<8x16xf32>
    %323 = arith.mulf %312, %322 : vector<8x16xf32>
    %324 = arith.addf %311, %323 : vector<8x16xf32>
    %325 = vector.extract_strided_slice %272 {offsets = [0, 4], sizes = [8, 16], strides = [1, 1]} : vector<8x20xf32> to vector<8x16xf32>
    %c24 = arith.constant 24 : index
    %326 = memref.load %arg2[%c24] : memref<225xf32, #tpu.memory_space<smem>>
    %327 = vector.broadcast %326 : f32 to vector<8x16xf32>
    %328 = arith.mulf %325, %327 : vector<8x16xf32>
    %329 = arith.addf %316, %328 : vector<8x16xf32>
    %c99 = arith.constant 99 : index
    %330 = memref.load %arg2[%c99] : memref<225xf32, #tpu.memory_space<smem>>
    %331 = vector.broadcast %330 : f32 to vector<8x16xf32>
    %332 = arith.mulf %325, %331 : vector<8x16xf32>
    %333 = arith.addf %320, %332 : vector<8x16xf32>
    %c174 = arith.constant 174 : index
    %334 = memref.load %arg2[%c174] : memref<225xf32, #tpu.memory_space<smem>>
    %335 = vector.broadcast %334 : f32 to vector<8x16xf32>
    %336 = arith.mulf %325, %335 : vector<8x16xf32>
    %337 = arith.addf %324, %336 : vector<8x16xf32>
    %c0_27 = arith.constant 0 : index
    %c0_28 = arith.constant 0 : index
    %c1_29 = arith.constant 1 : index
    %c0_30 = arith.constant 0 : index
    %c0_31 = arith.constant 0 : index
    %338 = vector.load %arg3[%c0_27, %c0_28, %c1_29, %c0_30, %c0_31] : memref<1x1x3x12x20xf32, #tpu.memory_space<vmem>>, vector<1x1x1x8x20xf32>
    %339 = vector.shape_cast %338 : vector<1x1x1x8x20xf32> to vector<8x20xf32>
    %340 = vector.extract_strided_slice %339 {offsets = [0, 0], sizes = [8, 16], strides = [1, 1]} : vector<8x20xf32> to vector<8x16xf32>
    %c25 = arith.constant 25 : index
    %341 = memref.load %arg2[%c25] : memref<225xf32, #tpu.memory_space<smem>>
    %342 = vector.broadcast %341 : f32 to vector<8x16xf32>
    %343 = arith.mulf %340, %342 : vector<8x16xf32>
    %344 = arith.addf %329, %343 : vector<8x16xf32>
    %c100 = arith.constant 100 : index
    %345 = memref.load %arg2[%c100] : memref<225xf32, #tpu.memory_space<smem>>
    %346 = vector.broadcast %345 : f32 to vector<8x16xf32>
    %347 = arith.mulf %340, %346 : vector<8x16xf32>
    %348 = arith.addf %333, %347 : vector<8x16xf32>
    %c175 = arith.constant 175 : index
    %349 = memref.load %arg2[%c175] : memref<225xf32, #tpu.memory_space<smem>>
    %350 = vector.broadcast %349 : f32 to vector<8x16xf32>
    %351 = arith.mulf %340, %350 : vector<8x16xf32>
    %352 = arith.addf %337, %351 : vector<8x16xf32>
    %353 = vector.extract_strided_slice %339 {offsets = [0, 1], sizes = [8, 16], strides = [1, 1]} : vector<8x20xf32> to vector<8x16xf32>
    %c26 = arith.constant 26 : index
    %354 = memref.load %arg2[%c26] : memref<225xf32, #tpu.memory_space<smem>>
    %355 = vector.broadcast %354 : f32 to vector<8x16xf32>
    %356 = arith.mulf %353, %355 : vector<8x16xf32>
    %357 = arith.addf %344, %356 : vector<8x16xf32>
    %c101 = arith.constant 101 : index
    %358 = memref.load %arg2[%c101] : memref<225xf32, #tpu.memory_space<smem>>
    %359 = vector.broadcast %358 : f32 to vector<8x16xf32>
    %360 = arith.mulf %353, %359 : vector<8x16xf32>
    %361 = arith.addf %348, %360 : vector<8x16xf32>
    %c176 = arith.constant 176 : index
    %362 = memref.load %arg2[%c176] : memref<225xf32, #tpu.memory_space<smem>>
    %363 = vector.broadcast %362 : f32 to vector<8x16xf32>
    %364 = arith.mulf %353, %363 : vector<8x16xf32>
    %365 = arith.addf %352, %364 : vector<8x16xf32>
    %366 = vector.extract_strided_slice %339 {offsets = [0, 2], sizes = [8, 16], strides = [1, 1]} : vector<8x20xf32> to vector<8x16xf32>
    %c27 = arith.constant 27 : index
    %367 = memref.load %arg2[%c27] : memref<225xf32, #tpu.memory_space<smem>>
    %368 = vector.broadcast %367 : f32 to vector<8x16xf32>
    %369 = arith.mulf %366, %368 : vector<8x16xf32>
    %370 = arith.addf %357, %369 : vector<8x16xf32>
    %c102 = arith.constant 102 : index
    %371 = memref.load %arg2[%c102] : memref<225xf32, #tpu.memory_space<smem>>
    %372 = vector.broadcast %371 : f32 to vector<8x16xf32>
    %373 = arith.mulf %366, %372 : vector<8x16xf32>
    %374 = arith.addf %361, %373 : vector<8x16xf32>
    %c177 = arith.constant 177 : index
    %375 = memref.load %arg2[%c177] : memref<225xf32, #tpu.memory_space<smem>>
    %376 = vector.broadcast %375 : f32 to vector<8x16xf32>
    %377 = arith.mulf %366, %376 : vector<8x16xf32>
    %378 = arith.addf %365, %377 : vector<8x16xf32>
    %379 = vector.extract_strided_slice %339 {offsets = [0, 3], sizes = [8, 16], strides = [1, 1]} : vector<8x20xf32> to vector<8x16xf32>
    %c28 = arith.constant 28 : index
    %380 = memref.load %arg2[%c28] : memref<225xf32, #tpu.memory_space<smem>>
    %381 = vector.broadcast %380 : f32 to vector<8x16xf32>
    %382 = arith.mulf %379, %381 : vector<8x16xf32>
    %383 = arith.addf %370, %382 : vector<8x16xf32>
    %c103 = arith.constant 103 : index
    %384 = memref.load %arg2[%c103] : memref<225xf32, #tpu.memory_space<smem>>
    %385 = vector.broadcast %384 : f32 to vector<8x16xf32>
    %386 = arith.mulf %379, %385 : vector<8x16xf32>
    %387 = arith.addf %374, %386 : vector<8x16xf32>
    %c178 = arith.constant 178 : index
    %388 = memref.load %arg2[%c178] : memref<225xf32, #tpu.memory_space<smem>>
    %389 = vector.broadcast %388 : f32 to vector<8x16xf32>
    %390 = arith.mulf %379, %389 : vector<8x16xf32>
    %391 = arith.addf %378, %390 : vector<8x16xf32>
    %392 = vector.extract_strided_slice %339 {offsets = [0, 4], sizes = [8, 16], strides = [1, 1]} : vector<8x20xf32> to vector<8x16xf32>
    %c29 = arith.constant 29 : index
    %393 = memref.load %arg2[%c29] : memref<225xf32, #tpu.memory_space<smem>>
    %394 = vector.broadcast %393 : f32 to vector<8x16xf32>
    %395 = arith.mulf %392, %394 : vector<8x16xf32>
    %396 = arith.addf %383, %395 : vector<8x16xf32>
    %c104 = arith.constant 104 : index
    %397 = memref.load %arg2[%c104] : memref<225xf32, #tpu.memory_space<smem>>
    %398 = vector.broadcast %397 : f32 to vector<8x16xf32>
    %399 = arith.mulf %392, %398 : vector<8x16xf32>
    %400 = arith.addf %387, %399 : vector<8x16xf32>
    %c179 = arith.constant 179 : index
    %401 = memref.load %arg2[%c179] : memref<225xf32, #tpu.memory_space<smem>>
    %402 = vector.broadcast %401 : f32 to vector<8x16xf32>
    %403 = arith.mulf %392, %402 : vector<8x16xf32>
    %404 = arith.addf %391, %403 : vector<8x16xf32>
    %c0_32 = arith.constant 0 : index
    %c0_33 = arith.constant 0 : index
    %c1_34 = arith.constant 1 : index
    %c1_35 = arith.constant 1 : index
    %c0_36 = arith.constant 0 : index
    %405 = vector.load %arg3[%c0_32, %c0_33, %c1_34, %c1_35, %c0_36] : memref<1x1x3x12x20xf32, #tpu.memory_space<vmem>>, vector<1x1x1x8x20xf32>
    %406 = vector.shape_cast %405 : vector<1x1x1x8x20xf32> to vector<8x20xf32>
    %407 = vector.extract_strided_slice %406 {offsets = [0, 0], sizes = [8, 16], strides = [1, 1]} : vector<8x20xf32> to vector<8x16xf32>
    %c30 = arith.constant 30 : index
    %408 = memref.load %arg2[%c30] : memref<225xf32, #tpu.memory_space<smem>>
    %409 = vector.broadcast %408 : f32 to vector<8x16xf32>
    %410 = arith.mulf %407, %409 : vector<8x16xf32>
    %411 = arith.addf %396, %410 : vector<8x16xf32>
    %c105 = arith.constant 105 : index
    %412 = memref.load %arg2[%c105] : memref<225xf32, #tpu.memory_space<smem>>
    %413 = vector.broadcast %412 : f32 to vector<8x16xf32>
    %414 = arith.mulf %407, %413 : vector<8x16xf32>
    %415 = arith.addf %400, %414 : vector<8x16xf32>
    %c180 = arith.constant 180 : index
    %416 = memref.load %arg2[%c180] : memref<225xf32, #tpu.memory_space<smem>>
    %417 = vector.broadcast %416 : f32 to vector<8x16xf32>
    %418 = arith.mulf %407, %417 : vector<8x16xf32>
    %419 = arith.addf %404, %418 : vector<8x16xf32>
    %420 = vector.extract_strided_slice %406 {offsets = [0, 1], sizes = [8, 16], strides = [1, 1]} : vector<8x20xf32> to vector<8x16xf32>
    %c31 = arith.constant 31 : index
    %421 = memref.load %arg2[%c31] : memref<225xf32, #tpu.memory_space<smem>>
    %422 = vector.broadcast %421 : f32 to vector<8x16xf32>
    %423 = arith.mulf %420, %422 : vector<8x16xf32>
    %424 = arith.addf %411, %423 : vector<8x16xf32>
    %c106 = arith.constant 106 : index
    %425 = memref.load %arg2[%c106] : memref<225xf32, #tpu.memory_space<smem>>
    %426 = vector.broadcast %425 : f32 to vector<8x16xf32>
    %427 = arith.mulf %420, %426 : vector<8x16xf32>
    %428 = arith.addf %415, %427 : vector<8x16xf32>
    %c181 = arith.constant 181 : index
    %429 = memref.load %arg2[%c181] : memref<225xf32, #tpu.memory_space<smem>>
    %430 = vector.broadcast %429 : f32 to vector<8x16xf32>
    %431 = arith.mulf %420, %430 : vector<8x16xf32>
    %432 = arith.addf %419, %431 : vector<8x16xf32>
    %433 = vector.extract_strided_slice %406 {offsets = [0, 2], sizes = [8, 16], strides = [1, 1]} : vector<8x20xf32> to vector<8x16xf32>
    %c32 = arith.constant 32 : index
    %434 = memref.load %arg2[%c32] : memref<225xf32, #tpu.memory_space<smem>>
    %435 = vector.broadcast %434 : f32 to vector<8x16xf32>
    %436 = arith.mulf %433, %435 : vector<8x16xf32>
    %437 = arith.addf %424, %436 : vector<8x16xf32>
    %c107 = arith.constant 107 : index
    %438 = memref.load %arg2[%c107] : memref<225xf32, #tpu.memory_space<smem>>
    %439 = vector.broadcast %438 : f32 to vector<8x16xf32>
    %440 = arith.mulf %433, %439 : vector<8x16xf32>
    %441 = arith.addf %428, %440 : vector<8x16xf32>
    %c182 = arith.constant 182 : index
    %442 = memref.load %arg2[%c182] : memref<225xf32, #tpu.memory_space<smem>>
    %443 = vector.broadcast %442 : f32 to vector<8x16xf32>
    %444 = arith.mulf %433, %443 : vector<8x16xf32>
    %445 = arith.addf %432, %444 : vector<8x16xf32>
    %446 = vector.extract_strided_slice %406 {offsets = [0, 3], sizes = [8, 16], strides = [1, 1]} : vector<8x20xf32> to vector<8x16xf32>
    %c33 = arith.constant 33 : index
    %447 = memref.load %arg2[%c33] : memref<225xf32, #tpu.memory_space<smem>>
    %448 = vector.broadcast %447 : f32 to vector<8x16xf32>
    %449 = arith.mulf %446, %448 : vector<8x16xf32>
    %450 = arith.addf %437, %449 : vector<8x16xf32>
    %c108 = arith.constant 108 : index
    %451 = memref.load %arg2[%c108] : memref<225xf32, #tpu.memory_space<smem>>
    %452 = vector.broadcast %451 : f32 to vector<8x16xf32>
    %453 = arith.mulf %446, %452 : vector<8x16xf32>
    %454 = arith.addf %441, %453 : vector<8x16xf32>
    %c183 = arith.constant 183 : index
    %455 = memref.load %arg2[%c183] : memref<225xf32, #tpu.memory_space<smem>>
    %456 = vector.broadcast %455 : f32 to vector<8x16xf32>
    %457 = arith.mulf %446, %456 : vector<8x16xf32>
    %458 = arith.addf %445, %457 : vector<8x16xf32>
    %459 = vector.extract_strided_slice %406 {offsets = [0, 4], sizes = [8, 16], strides = [1, 1]} : vector<8x20xf32> to vector<8x16xf32>
    %c34 = arith.constant 34 : index
    %460 = memref.load %arg2[%c34] : memref<225xf32, #tpu.memory_space<smem>>
    %461 = vector.broadcast %460 : f32 to vector<8x16xf32>
    %462 = arith.mulf %459, %461 : vector<8x16xf32>
    %463 = arith.addf %450, %462 : vector<8x16xf32>
    %c109 = arith.constant 109 : index
    %464 = memref.load %arg2[%c109] : memref<225xf32, #tpu.memory_space<smem>>
    %465 = vector.broadcast %464 : f32 to vector<8x16xf32>
    %466 = arith.mulf %459, %465 : vector<8x16xf32>
    %467 = arith.addf %454, %466 : vector<8x16xf32>
    %c184 = arith.constant 184 : index
    %468 = memref.load %arg2[%c184] : memref<225xf32, #tpu.memory_space<smem>>
    %469 = vector.broadcast %468 : f32 to vector<8x16xf32>
    %470 = arith.mulf %459, %469 : vector<8x16xf32>
    %471 = arith.addf %458, %470 : vector<8x16xf32>
    %c0_37 = arith.constant 0 : index
    %c0_38 = arith.constant 0 : index
    %c1_39 = arith.constant 1 : index
    %c2_40 = arith.constant 2 : index
    %c0_41 = arith.constant 0 : index
    %472 = vector.load %arg3[%c0_37, %c0_38, %c1_39, %c2_40, %c0_41] : memref<1x1x3x12x20xf32, #tpu.memory_space<vmem>>, vector<1x1x1x8x20xf32>
    %473 = vector.shape_cast %472 : vector<1x1x1x8x20xf32> to vector<8x20xf32>
    %474 = vector.extract_strided_slice %473 {offsets = [0, 0], sizes = [8, 16], strides = [1, 1]} : vector<8x20xf32> to vector<8x16xf32>
    %c35 = arith.constant 35 : index
    %475 = memref.load %arg2[%c35] : memref<225xf32, #tpu.memory_space<smem>>
    %476 = vector.broadcast %475 : f32 to vector<8x16xf32>
    %477 = arith.mulf %474, %476 : vector<8x16xf32>
    %478 = arith.addf %463, %477 : vector<8x16xf32>
    %c110 = arith.constant 110 : index
    %479 = memref.load %arg2[%c110] : memref<225xf32, #tpu.memory_space<smem>>
    %480 = vector.broadcast %479 : f32 to vector<8x16xf32>
    %481 = arith.mulf %474, %480 : vector<8x16xf32>
    %482 = arith.addf %467, %481 : vector<8x16xf32>
    %c185 = arith.constant 185 : index
    %483 = memref.load %arg2[%c185] : memref<225xf32, #tpu.memory_space<smem>>
    %484 = vector.broadcast %483 : f32 to vector<8x16xf32>
    %485 = arith.mulf %474, %484 : vector<8x16xf32>
    %486 = arith.addf %471, %485 : vector<8x16xf32>
    %487 = vector.extract_strided_slice %473 {offsets = [0, 1], sizes = [8, 16], strides = [1, 1]} : vector<8x20xf32> to vector<8x16xf32>
    %c36 = arith.constant 36 : index
    %488 = memref.load %arg2[%c36] : memref<225xf32, #tpu.memory_space<smem>>
    %489 = vector.broadcast %488 : f32 to vector<8x16xf32>
    %490 = arith.mulf %487, %489 : vector<8x16xf32>
    %491 = arith.addf %478, %490 : vector<8x16xf32>
    %c111 = arith.constant 111 : index
    %492 = memref.load %arg2[%c111] : memref<225xf32, #tpu.memory_space<smem>>
    %493 = vector.broadcast %492 : f32 to vector<8x16xf32>
    %494 = arith.mulf %487, %493 : vector<8x16xf32>
    %495 = arith.addf %482, %494 : vector<8x16xf32>
    %c186 = arith.constant 186 : index
    %496 = memref.load %arg2[%c186] : memref<225xf32, #tpu.memory_space<smem>>
    %497 = vector.broadcast %496 : f32 to vector<8x16xf32>
    %498 = arith.mulf %487, %497 : vector<8x16xf32>
    %499 = arith.addf %486, %498 : vector<8x16xf32>
    %500 = vector.extract_strided_slice %473 {offsets = [0, 2], sizes = [8, 16], strides = [1, 1]} : vector<8x20xf32> to vector<8x16xf32>
    %c37 = arith.constant 37 : index
    %501 = memref.load %arg2[%c37] : memref<225xf32, #tpu.memory_space<smem>>
    %502 = vector.broadcast %501 : f32 to vector<8x16xf32>
    %503 = arith.mulf %500, %502 : vector<8x16xf32>
    %504 = arith.addf %491, %503 : vector<8x16xf32>
    %c112 = arith.constant 112 : index
    %505 = memref.load %arg2[%c112] : memref<225xf32, #tpu.memory_space<smem>>
    %506 = vector.broadcast %505 : f32 to vector<8x16xf32>
    %507 = arith.mulf %500, %506 : vector<8x16xf32>
    %508 = arith.addf %495, %507 : vector<8x16xf32>
    %c187 = arith.constant 187 : index
    %509 = memref.load %arg2[%c187] : memref<225xf32, #tpu.memory_space<smem>>
    %510 = vector.broadcast %509 : f32 to vector<8x16xf32>
    %511 = arith.mulf %500, %510 : vector<8x16xf32>
    %512 = arith.addf %499, %511 : vector<8x16xf32>
    %513 = vector.extract_strided_slice %473 {offsets = [0, 3], sizes = [8, 16], strides = [1, 1]} : vector<8x20xf32> to vector<8x16xf32>
    %c38 = arith.constant 38 : index
    %514 = memref.load %arg2[%c38] : memref<225xf32, #tpu.memory_space<smem>>
    %515 = vector.broadcast %514 : f32 to vector<8x16xf32>
    %516 = arith.mulf %513, %515 : vector<8x16xf32>
    %517 = arith.addf %504, %516 : vector<8x16xf32>
    %c113 = arith.constant 113 : index
    %518 = memref.load %arg2[%c113] : memref<225xf32, #tpu.memory_space<smem>>
    %519 = vector.broadcast %518 : f32 to vector<8x16xf32>
    %520 = arith.mulf %513, %519 : vector<8x16xf32>
    %521 = arith.addf %508, %520 : vector<8x16xf32>
    %c188 = arith.constant 188 : index
    %522 = memref.load %arg2[%c188] : memref<225xf32, #tpu.memory_space<smem>>
    %523 = vector.broadcast %522 : f32 to vector<8x16xf32>
    %524 = arith.mulf %513, %523 : vector<8x16xf32>
    %525 = arith.addf %512, %524 : vector<8x16xf32>
    %526 = vector.extract_strided_slice %473 {offsets = [0, 4], sizes = [8, 16], strides = [1, 1]} : vector<8x20xf32> to vector<8x16xf32>
    %c39 = arith.constant 39 : index
    %527 = memref.load %arg2[%c39] : memref<225xf32, #tpu.memory_space<smem>>
    %528 = vector.broadcast %527 : f32 to vector<8x16xf32>
    %529 = arith.mulf %526, %528 : vector<8x16xf32>
    %530 = arith.addf %517, %529 : vector<8x16xf32>
    %c114 = arith.constant 114 : index
    %531 = memref.load %arg2[%c114] : memref<225xf32, #tpu.memory_space<smem>>
    %532 = vector.broadcast %531 : f32 to vector<8x16xf32>
    %533 = arith.mulf %526, %532 : vector<8x16xf32>
    %534 = arith.addf %521, %533 : vector<8x16xf32>
    %c189 = arith.constant 189 : index
    %535 = memref.load %arg2[%c189] : memref<225xf32, #tpu.memory_space<smem>>
    %536 = vector.broadcast %535 : f32 to vector<8x16xf32>
    %537 = arith.mulf %526, %536 : vector<8x16xf32>
    %538 = arith.addf %525, %537 : vector<8x16xf32>
    %c0_42 = arith.constant 0 : index
    %c0_43 = arith.constant 0 : index
    %c1_44 = arith.constant 1 : index
    %c3_45 = arith.constant 3 : index
    %c0_46 = arith.constant 0 : index
    %539 = vector.load %arg3[%c0_42, %c0_43, %c1_44, %c3_45, %c0_46] : memref<1x1x3x12x20xf32, #tpu.memory_space<vmem>>, vector<1x1x1x8x20xf32>
    %540 = vector.shape_cast %539 : vector<1x1x1x8x20xf32> to vector<8x20xf32>
    %541 = vector.extract_strided_slice %540 {offsets = [0, 0], sizes = [8, 16], strides = [1, 1]} : vector<8x20xf32> to vector<8x16xf32>
    %c40 = arith.constant 40 : index
    %542 = memref.load %arg2[%c40] : memref<225xf32, #tpu.memory_space<smem>>
    %543 = vector.broadcast %542 : f32 to vector<8x16xf32>
    %544 = arith.mulf %541, %543 : vector<8x16xf32>
    %545 = arith.addf %530, %544 : vector<8x16xf32>
    %c115 = arith.constant 115 : index
    %546 = memref.load %arg2[%c115] : memref<225xf32, #tpu.memory_space<smem>>
    %547 = vector.broadcast %546 : f32 to vector<8x16xf32>
    %548 = arith.mulf %541, %547 : vector<8x16xf32>
    %549 = arith.addf %534, %548 : vector<8x16xf32>
    %c190 = arith.constant 190 : index
    %550 = memref.load %arg2[%c190] : memref<225xf32, #tpu.memory_space<smem>>
    %551 = vector.broadcast %550 : f32 to vector<8x16xf32>
    %552 = arith.mulf %541, %551 : vector<8x16xf32>
    %553 = arith.addf %538, %552 : vector<8x16xf32>
    %554 = vector.extract_strided_slice %540 {offsets = [0, 1], sizes = [8, 16], strides = [1, 1]} : vector<8x20xf32> to vector<8x16xf32>
    %c41 = arith.constant 41 : index
    %555 = memref.load %arg2[%c41] : memref<225xf32, #tpu.memory_space<smem>>
    %556 = vector.broadcast %555 : f32 to vector<8x16xf32>
    %557 = arith.mulf %554, %556 : vector<8x16xf32>
    %558 = arith.addf %545, %557 : vector<8x16xf32>
    %c116 = arith.constant 116 : index
    %559 = memref.load %arg2[%c116] : memref<225xf32, #tpu.memory_space<smem>>
    %560 = vector.broadcast %559 : f32 to vector<8x16xf32>
    %561 = arith.mulf %554, %560 : vector<8x16xf32>
    %562 = arith.addf %549, %561 : vector<8x16xf32>
    %c191 = arith.constant 191 : index
    %563 = memref.load %arg2[%c191] : memref<225xf32, #tpu.memory_space<smem>>
    %564 = vector.broadcast %563 : f32 to vector<8x16xf32>
    %565 = arith.mulf %554, %564 : vector<8x16xf32>
    %566 = arith.addf %553, %565 : vector<8x16xf32>
    %567 = vector.extract_strided_slice %540 {offsets = [0, 2], sizes = [8, 16], strides = [1, 1]} : vector<8x20xf32> to vector<8x16xf32>
    %c42 = arith.constant 42 : index
    %568 = memref.load %arg2[%c42] : memref<225xf32, #tpu.memory_space<smem>>
    %569 = vector.broadcast %568 : f32 to vector<8x16xf32>
    %570 = arith.mulf %567, %569 : vector<8x16xf32>
    %571 = arith.addf %558, %570 : vector<8x16xf32>
    %c117 = arith.constant 117 : index
    %572 = memref.load %arg2[%c117] : memref<225xf32, #tpu.memory_space<smem>>
    %573 = vector.broadcast %572 : f32 to vector<8x16xf32>
    %574 = arith.mulf %567, %573 : vector<8x16xf32>
    %575 = arith.addf %562, %574 : vector<8x16xf32>
    %c192 = arith.constant 192 : index
    %576 = memref.load %arg2[%c192] : memref<225xf32, #tpu.memory_space<smem>>
    %577 = vector.broadcast %576 : f32 to vector<8x16xf32>
    %578 = arith.mulf %567, %577 : vector<8x16xf32>
    %579 = arith.addf %566, %578 : vector<8x16xf32>
    %580 = vector.extract_strided_slice %540 {offsets = [0, 3], sizes = [8, 16], strides = [1, 1]} : vector<8x20xf32> to vector<8x16xf32>
    %c43 = arith.constant 43 : index
    %581 = memref.load %arg2[%c43] : memref<225xf32, #tpu.memory_space<smem>>
    %582 = vector.broadcast %581 : f32 to vector<8x16xf32>
    %583 = arith.mulf %580, %582 : vector<8x16xf32>
    %584 = arith.addf %571, %583 : vector<8x16xf32>
    %c118 = arith.constant 118 : index
    %585 = memref.load %arg2[%c118] : memref<225xf32, #tpu.memory_space<smem>>
    %586 = vector.broadcast %585 : f32 to vector<8x16xf32>
    %587 = arith.mulf %580, %586 : vector<8x16xf32>
    %588 = arith.addf %575, %587 : vector<8x16xf32>
    %c193 = arith.constant 193 : index
    %589 = memref.load %arg2[%c193] : memref<225xf32, #tpu.memory_space<smem>>
    %590 = vector.broadcast %589 : f32 to vector<8x16xf32>
    %591 = arith.mulf %580, %590 : vector<8x16xf32>
    %592 = arith.addf %579, %591 : vector<8x16xf32>
    %593 = vector.extract_strided_slice %540 {offsets = [0, 4], sizes = [8, 16], strides = [1, 1]} : vector<8x20xf32> to vector<8x16xf32>
    %c44 = arith.constant 44 : index
    %594 = memref.load %arg2[%c44] : memref<225xf32, #tpu.memory_space<smem>>
    %595 = vector.broadcast %594 : f32 to vector<8x16xf32>
    %596 = arith.mulf %593, %595 : vector<8x16xf32>
    %597 = arith.addf %584, %596 : vector<8x16xf32>
    %c119 = arith.constant 119 : index
    %598 = memref.load %arg2[%c119] : memref<225xf32, #tpu.memory_space<smem>>
    %599 = vector.broadcast %598 : f32 to vector<8x16xf32>
    %600 = arith.mulf %593, %599 : vector<8x16xf32>
    %601 = arith.addf %588, %600 : vector<8x16xf32>
    %c194 = arith.constant 194 : index
    %602 = memref.load %arg2[%c194] : memref<225xf32, #tpu.memory_space<smem>>
    %603 = vector.broadcast %602 : f32 to vector<8x16xf32>
    %604 = arith.mulf %593, %603 : vector<8x16xf32>
    %605 = arith.addf %592, %604 : vector<8x16xf32>
    %c0_47 = arith.constant 0 : index
    %c0_48 = arith.constant 0 : index
    %c1_49 = arith.constant 1 : index
    %c4_50 = arith.constant 4 : index
    %c0_51 = arith.constant 0 : index
    %606 = vector.load %arg3[%c0_47, %c0_48, %c1_49, %c4_50, %c0_51] : memref<1x1x3x12x20xf32, #tpu.memory_space<vmem>>, vector<1x1x1x8x20xf32>
    %607 = vector.shape_cast %606 : vector<1x1x1x8x20xf32> to vector<8x20xf32>
    %608 = vector.extract_strided_slice %607 {offsets = [0, 0], sizes = [8, 16], strides = [1, 1]} : vector<8x20xf32> to vector<8x16xf32>
    %c45 = arith.constant 45 : index
    %609 = memref.load %arg2[%c45] : memref<225xf32, #tpu.memory_space<smem>>
    %610 = vector.broadcast %609 : f32 to vector<8x16xf32>
    %611 = arith.mulf %608, %610 : vector<8x16xf32>
    %612 = arith.addf %597, %611 : vector<8x16xf32>
    %c120 = arith.constant 120 : index
    %613 = memref.load %arg2[%c120] : memref<225xf32, #tpu.memory_space<smem>>
    %614 = vector.broadcast %613 : f32 to vector<8x16xf32>
    %615 = arith.mulf %608, %614 : vector<8x16xf32>
    %616 = arith.addf %601, %615 : vector<8x16xf32>
    %c195 = arith.constant 195 : index
    %617 = memref.load %arg2[%c195] : memref<225xf32, #tpu.memory_space<smem>>
    %618 = vector.broadcast %617 : f32 to vector<8x16xf32>
    %619 = arith.mulf %608, %618 : vector<8x16xf32>
    %620 = arith.addf %605, %619 : vector<8x16xf32>
    %621 = vector.extract_strided_slice %607 {offsets = [0, 1], sizes = [8, 16], strides = [1, 1]} : vector<8x20xf32> to vector<8x16xf32>
    %c46 = arith.constant 46 : index
    %622 = memref.load %arg2[%c46] : memref<225xf32, #tpu.memory_space<smem>>
    %623 = vector.broadcast %622 : f32 to vector<8x16xf32>
    %624 = arith.mulf %621, %623 : vector<8x16xf32>
    %625 = arith.addf %612, %624 : vector<8x16xf32>
    %c121 = arith.constant 121 : index
    %626 = memref.load %arg2[%c121] : memref<225xf32, #tpu.memory_space<smem>>
    %627 = vector.broadcast %626 : f32 to vector<8x16xf32>
    %628 = arith.mulf %621, %627 : vector<8x16xf32>
    %629 = arith.addf %616, %628 : vector<8x16xf32>
    %c196 = arith.constant 196 : index
    %630 = memref.load %arg2[%c196] : memref<225xf32, #tpu.memory_space<smem>>
    %631 = vector.broadcast %630 : f32 to vector<8x16xf32>
    %632 = arith.mulf %621, %631 : vector<8x16xf32>
    %633 = arith.addf %620, %632 : vector<8x16xf32>
    %634 = vector.extract_strided_slice %607 {offsets = [0, 2], sizes = [8, 16], strides = [1, 1]} : vector<8x20xf32> to vector<8x16xf32>
    %c47 = arith.constant 47 : index
    %635 = memref.load %arg2[%c47] : memref<225xf32, #tpu.memory_space<smem>>
    %636 = vector.broadcast %635 : f32 to vector<8x16xf32>
    %637 = arith.mulf %634, %636 : vector<8x16xf32>
    %638 = arith.addf %625, %637 : vector<8x16xf32>
    %c122 = arith.constant 122 : index
    %639 = memref.load %arg2[%c122] : memref<225xf32, #tpu.memory_space<smem>>
    %640 = vector.broadcast %639 : f32 to vector<8x16xf32>
    %641 = arith.mulf %634, %640 : vector<8x16xf32>
    %642 = arith.addf %629, %641 : vector<8x16xf32>
    %c197 = arith.constant 197 : index
    %643 = memref.load %arg2[%c197] : memref<225xf32, #tpu.memory_space<smem>>
    %644 = vector.broadcast %643 : f32 to vector<8x16xf32>
    %645 = arith.mulf %634, %644 : vector<8x16xf32>
    %646 = arith.addf %633, %645 : vector<8x16xf32>
    %647 = vector.extract_strided_slice %607 {offsets = [0, 3], sizes = [8, 16], strides = [1, 1]} : vector<8x20xf32> to vector<8x16xf32>
    %c48 = arith.constant 48 : index
    %648 = memref.load %arg2[%c48] : memref<225xf32, #tpu.memory_space<smem>>
    %649 = vector.broadcast %648 : f32 to vector<8x16xf32>
    %650 = arith.mulf %647, %649 : vector<8x16xf32>
    %651 = arith.addf %638, %650 : vector<8x16xf32>
    %c123 = arith.constant 123 : index
    %652 = memref.load %arg2[%c123] : memref<225xf32, #tpu.memory_space<smem>>
    %653 = vector.broadcast %652 : f32 to vector<8x16xf32>
    %654 = arith.mulf %647, %653 : vector<8x16xf32>
    %655 = arith.addf %642, %654 : vector<8x16xf32>
    %c198 = arith.constant 198 : index
    %656 = memref.load %arg2[%c198] : memref<225xf32, #tpu.memory_space<smem>>
    %657 = vector.broadcast %656 : f32 to vector<8x16xf32>
    %658 = arith.mulf %647, %657 : vector<8x16xf32>
    %659 = arith.addf %646, %658 : vector<8x16xf32>
    %660 = vector.extract_strided_slice %607 {offsets = [0, 4], sizes = [8, 16], strides = [1, 1]} : vector<8x20xf32> to vector<8x16xf32>
    %c49 = arith.constant 49 : index
    %661 = memref.load %arg2[%c49] : memref<225xf32, #tpu.memory_space<smem>>
    %662 = vector.broadcast %661 : f32 to vector<8x16xf32>
    %663 = arith.mulf %660, %662 : vector<8x16xf32>
    %664 = arith.addf %651, %663 : vector<8x16xf32>
    %c124 = arith.constant 124 : index
    %665 = memref.load %arg2[%c124] : memref<225xf32, #tpu.memory_space<smem>>
    %666 = vector.broadcast %665 : f32 to vector<8x16xf32>
    %667 = arith.mulf %660, %666 : vector<8x16xf32>
    %668 = arith.addf %655, %667 : vector<8x16xf32>
    %c199 = arith.constant 199 : index
    %669 = memref.load %arg2[%c199] : memref<225xf32, #tpu.memory_space<smem>>
    %670 = vector.broadcast %669 : f32 to vector<8x16xf32>
    %671 = arith.mulf %660, %670 : vector<8x16xf32>
    %672 = arith.addf %659, %671 : vector<8x16xf32>
    %c0_52 = arith.constant 0 : index
    %c0_53 = arith.constant 0 : index
    %c2_54 = arith.constant 2 : index
    %c0_55 = arith.constant 0 : index
    %c0_56 = arith.constant 0 : index
    %673 = vector.load %arg3[%c0_52, %c0_53, %c2_54, %c0_55, %c0_56] : memref<1x1x3x12x20xf32, #tpu.memory_space<vmem>>, vector<1x1x1x8x20xf32>
    %674 = vector.shape_cast %673 : vector<1x1x1x8x20xf32> to vector<8x20xf32>
    %675 = vector.extract_strided_slice %674 {offsets = [0, 0], sizes = [8, 16], strides = [1, 1]} : vector<8x20xf32> to vector<8x16xf32>
    %c50 = arith.constant 50 : index
    %676 = memref.load %arg2[%c50] : memref<225xf32, #tpu.memory_space<smem>>
    %677 = vector.broadcast %676 : f32 to vector<8x16xf32>
    %678 = arith.mulf %675, %677 : vector<8x16xf32>
    %679 = arith.addf %664, %678 : vector<8x16xf32>
    %c125 = arith.constant 125 : index
    %680 = memref.load %arg2[%c125] : memref<225xf32, #tpu.memory_space<smem>>
    %681 = vector.broadcast %680 : f32 to vector<8x16xf32>
    %682 = arith.mulf %675, %681 : vector<8x16xf32>
    %683 = arith.addf %668, %682 : vector<8x16xf32>
    %c200 = arith.constant 200 : index
    %684 = memref.load %arg2[%c200] : memref<225xf32, #tpu.memory_space<smem>>
    %685 = vector.broadcast %684 : f32 to vector<8x16xf32>
    %686 = arith.mulf %675, %685 : vector<8x16xf32>
    %687 = arith.addf %672, %686 : vector<8x16xf32>
    %688 = vector.extract_strided_slice %674 {offsets = [0, 1], sizes = [8, 16], strides = [1, 1]} : vector<8x20xf32> to vector<8x16xf32>
    %c51 = arith.constant 51 : index
    %689 = memref.load %arg2[%c51] : memref<225xf32, #tpu.memory_space<smem>>
    %690 = vector.broadcast %689 : f32 to vector<8x16xf32>
    %691 = arith.mulf %688, %690 : vector<8x16xf32>
    %692 = arith.addf %679, %691 : vector<8x16xf32>
    %c126 = arith.constant 126 : index
    %693 = memref.load %arg2[%c126] : memref<225xf32, #tpu.memory_space<smem>>
    %694 = vector.broadcast %693 : f32 to vector<8x16xf32>
    %695 = arith.mulf %688, %694 : vector<8x16xf32>
    %696 = arith.addf %683, %695 : vector<8x16xf32>
    %c201 = arith.constant 201 : index
    %697 = memref.load %arg2[%c201] : memref<225xf32, #tpu.memory_space<smem>>
    %698 = vector.broadcast %697 : f32 to vector<8x16xf32>
    %699 = arith.mulf %688, %698 : vector<8x16xf32>
    %700 = arith.addf %687, %699 : vector<8x16xf32>
    %701 = vector.extract_strided_slice %674 {offsets = [0, 2], sizes = [8, 16], strides = [1, 1]} : vector<8x20xf32> to vector<8x16xf32>
    %c52 = arith.constant 52 : index
    %702 = memref.load %arg2[%c52] : memref<225xf32, #tpu.memory_space<smem>>
    %703 = vector.broadcast %702 : f32 to vector<8x16xf32>
    %704 = arith.mulf %701, %703 : vector<8x16xf32>
    %705 = arith.addf %692, %704 : vector<8x16xf32>
    %c127 = arith.constant 127 : index
    %706 = memref.load %arg2[%c127] : memref<225xf32, #tpu.memory_space<smem>>
    %707 = vector.broadcast %706 : f32 to vector<8x16xf32>
    %708 = arith.mulf %701, %707 : vector<8x16xf32>
    %709 = arith.addf %696, %708 : vector<8x16xf32>
    %c202 = arith.constant 202 : index
    %710 = memref.load %arg2[%c202] : memref<225xf32, #tpu.memory_space<smem>>
    %711 = vector.broadcast %710 : f32 to vector<8x16xf32>
    %712 = arith.mulf %701, %711 : vector<8x16xf32>
    %713 = arith.addf %700, %712 : vector<8x16xf32>
    %714 = vector.extract_strided_slice %674 {offsets = [0, 3], sizes = [8, 16], strides = [1, 1]} : vector<8x20xf32> to vector<8x16xf32>
    %c53 = arith.constant 53 : index
    %715 = memref.load %arg2[%c53] : memref<225xf32, #tpu.memory_space<smem>>
    %716 = vector.broadcast %715 : f32 to vector<8x16xf32>
    %717 = arith.mulf %714, %716 : vector<8x16xf32>
    %718 = arith.addf %705, %717 : vector<8x16xf32>
    %c128 = arith.constant 128 : index
    %719 = memref.load %arg2[%c128] : memref<225xf32, #tpu.memory_space<smem>>
    %720 = vector.broadcast %719 : f32 to vector<8x16xf32>
    %721 = arith.mulf %714, %720 : vector<8x16xf32>
    %722 = arith.addf %709, %721 : vector<8x16xf32>
    %c203 = arith.constant 203 : index
    %723 = memref.load %arg2[%c203] : memref<225xf32, #tpu.memory_space<smem>>
    %724 = vector.broadcast %723 : f32 to vector<8x16xf32>
    %725 = arith.mulf %714, %724 : vector<8x16xf32>
    %726 = arith.addf %713, %725 : vector<8x16xf32>
    %727 = vector.extract_strided_slice %674 {offsets = [0, 4], sizes = [8, 16], strides = [1, 1]} : vector<8x20xf32> to vector<8x16xf32>
    %c54 = arith.constant 54 : index
    %728 = memref.load %arg2[%c54] : memref<225xf32, #tpu.memory_space<smem>>
    %729 = vector.broadcast %728 : f32 to vector<8x16xf32>
    %730 = arith.mulf %727, %729 : vector<8x16xf32>
    %731 = arith.addf %718, %730 : vector<8x16xf32>
    %c129 = arith.constant 129 : index
    %732 = memref.load %arg2[%c129] : memref<225xf32, #tpu.memory_space<smem>>
    %733 = vector.broadcast %732 : f32 to vector<8x16xf32>
    %734 = arith.mulf %727, %733 : vector<8x16xf32>
    %735 = arith.addf %722, %734 : vector<8x16xf32>
    %c204 = arith.constant 204 : index
    %736 = memref.load %arg2[%c204] : memref<225xf32, #tpu.memory_space<smem>>
    %737 = vector.broadcast %736 : f32 to vector<8x16xf32>
    %738 = arith.mulf %727, %737 : vector<8x16xf32>
    %739 = arith.addf %726, %738 : vector<8x16xf32>
    %c0_57 = arith.constant 0 : index
    %c0_58 = arith.constant 0 : index
    %c2_59 = arith.constant 2 : index
    %c1_60 = arith.constant 1 : index
    %c0_61 = arith.constant 0 : index
    %740 = vector.load %arg3[%c0_57, %c0_58, %c2_59, %c1_60, %c0_61] : memref<1x1x3x12x20xf32, #tpu.memory_space<vmem>>, vector<1x1x1x8x20xf32>
    %741 = vector.shape_cast %740 : vector<1x1x1x8x20xf32> to vector<8x20xf32>
    %742 = vector.extract_strided_slice %741 {offsets = [0, 0], sizes = [8, 16], strides = [1, 1]} : vector<8x20xf32> to vector<8x16xf32>
    %c55 = arith.constant 55 : index
    %743 = memref.load %arg2[%c55] : memref<225xf32, #tpu.memory_space<smem>>
    %744 = vector.broadcast %743 : f32 to vector<8x16xf32>
    %745 = arith.mulf %742, %744 : vector<8x16xf32>
    %746 = arith.addf %731, %745 : vector<8x16xf32>
    %c130 = arith.constant 130 : index
    %747 = memref.load %arg2[%c130] : memref<225xf32, #tpu.memory_space<smem>>
    %748 = vector.broadcast %747 : f32 to vector<8x16xf32>
    %749 = arith.mulf %742, %748 : vector<8x16xf32>
    %750 = arith.addf %735, %749 : vector<8x16xf32>
    %c205 = arith.constant 205 : index
    %751 = memref.load %arg2[%c205] : memref<225xf32, #tpu.memory_space<smem>>
    %752 = vector.broadcast %751 : f32 to vector<8x16xf32>
    %753 = arith.mulf %742, %752 : vector<8x16xf32>
    %754 = arith.addf %739, %753 : vector<8x16xf32>
    %755 = vector.extract_strided_slice %741 {offsets = [0, 1], sizes = [8, 16], strides = [1, 1]} : vector<8x20xf32> to vector<8x16xf32>
    %c56 = arith.constant 56 : index
    %756 = memref.load %arg2[%c56] : memref<225xf32, #tpu.memory_space<smem>>
    %757 = vector.broadcast %756 : f32 to vector<8x16xf32>
    %758 = arith.mulf %755, %757 : vector<8x16xf32>
    %759 = arith.addf %746, %758 : vector<8x16xf32>
    %c131 = arith.constant 131 : index
    %760 = memref.load %arg2[%c131] : memref<225xf32, #tpu.memory_space<smem>>
    %761 = vector.broadcast %760 : f32 to vector<8x16xf32>
    %762 = arith.mulf %755, %761 : vector<8x16xf32>
    %763 = arith.addf %750, %762 : vector<8x16xf32>
    %c206 = arith.constant 206 : index
    %764 = memref.load %arg2[%c206] : memref<225xf32, #tpu.memory_space<smem>>
    %765 = vector.broadcast %764 : f32 to vector<8x16xf32>
    %766 = arith.mulf %755, %765 : vector<8x16xf32>
    %767 = arith.addf %754, %766 : vector<8x16xf32>
    %768 = vector.extract_strided_slice %741 {offsets = [0, 2], sizes = [8, 16], strides = [1, 1]} : vector<8x20xf32> to vector<8x16xf32>
    %c57 = arith.constant 57 : index
    %769 = memref.load %arg2[%c57] : memref<225xf32, #tpu.memory_space<smem>>
    %770 = vector.broadcast %769 : f32 to vector<8x16xf32>
    %771 = arith.mulf %768, %770 : vector<8x16xf32>
    %772 = arith.addf %759, %771 : vector<8x16xf32>
    %c132 = arith.constant 132 : index
    %773 = memref.load %arg2[%c132] : memref<225xf32, #tpu.memory_space<smem>>
    %774 = vector.broadcast %773 : f32 to vector<8x16xf32>
    %775 = arith.mulf %768, %774 : vector<8x16xf32>
    %776 = arith.addf %763, %775 : vector<8x16xf32>
    %c207 = arith.constant 207 : index
    %777 = memref.load %arg2[%c207] : memref<225xf32, #tpu.memory_space<smem>>
    %778 = vector.broadcast %777 : f32 to vector<8x16xf32>
    %779 = arith.mulf %768, %778 : vector<8x16xf32>
    %780 = arith.addf %767, %779 : vector<8x16xf32>
    %781 = vector.extract_strided_slice %741 {offsets = [0, 3], sizes = [8, 16], strides = [1, 1]} : vector<8x20xf32> to vector<8x16xf32>
    %c58 = arith.constant 58 : index
    %782 = memref.load %arg2[%c58] : memref<225xf32, #tpu.memory_space<smem>>
    %783 = vector.broadcast %782 : f32 to vector<8x16xf32>
    %784 = arith.mulf %781, %783 : vector<8x16xf32>
    %785 = arith.addf %772, %784 : vector<8x16xf32>
    %c133 = arith.constant 133 : index
    %786 = memref.load %arg2[%c133] : memref<225xf32, #tpu.memory_space<smem>>
    %787 = vector.broadcast %786 : f32 to vector<8x16xf32>
    %788 = arith.mulf %781, %787 : vector<8x16xf32>
    %789 = arith.addf %776, %788 : vector<8x16xf32>
    %c208 = arith.constant 208 : index
    %790 = memref.load %arg2[%c208] : memref<225xf32, #tpu.memory_space<smem>>
    %791 = vector.broadcast %790 : f32 to vector<8x16xf32>
    %792 = arith.mulf %781, %791 : vector<8x16xf32>
    %793 = arith.addf %780, %792 : vector<8x16xf32>
    %794 = vector.extract_strided_slice %741 {offsets = [0, 4], sizes = [8, 16], strides = [1, 1]} : vector<8x20xf32> to vector<8x16xf32>
    %c59 = arith.constant 59 : index
    %795 = memref.load %arg2[%c59] : memref<225xf32, #tpu.memory_space<smem>>
    %796 = vector.broadcast %795 : f32 to vector<8x16xf32>
    %797 = arith.mulf %794, %796 : vector<8x16xf32>
    %798 = arith.addf %785, %797 : vector<8x16xf32>
    %c134 = arith.constant 134 : index
    %799 = memref.load %arg2[%c134] : memref<225xf32, #tpu.memory_space<smem>>
    %800 = vector.broadcast %799 : f32 to vector<8x16xf32>
    %801 = arith.mulf %794, %800 : vector<8x16xf32>
    %802 = arith.addf %789, %801 : vector<8x16xf32>
    %c209 = arith.constant 209 : index
    %803 = memref.load %arg2[%c209] : memref<225xf32, #tpu.memory_space<smem>>
    %804 = vector.broadcast %803 : f32 to vector<8x16xf32>
    %805 = arith.mulf %794, %804 : vector<8x16xf32>
    %806 = arith.addf %793, %805 : vector<8x16xf32>
    %c0_62 = arith.constant 0 : index
    %c0_63 = arith.constant 0 : index
    %c2_64 = arith.constant 2 : index
    %c2_65 = arith.constant 2 : index
    %c0_66 = arith.constant 0 : index
    %807 = vector.load %arg3[%c0_62, %c0_63, %c2_64, %c2_65, %c0_66] : memref<1x1x3x12x20xf32, #tpu.memory_space<vmem>>, vector<1x1x1x8x20xf32>
    %808 = vector.shape_cast %807 : vector<1x1x1x8x20xf32> to vector<8x20xf32>
    %809 = vector.extract_strided_slice %808 {offsets = [0, 0], sizes = [8, 16], strides = [1, 1]} : vector<8x20xf32> to vector<8x16xf32>
    %c60 = arith.constant 60 : index
    %810 = memref.load %arg2[%c60] : memref<225xf32, #tpu.memory_space<smem>>
    %811 = vector.broadcast %810 : f32 to vector<8x16xf32>
    %812 = arith.mulf %809, %811 : vector<8x16xf32>
    %813 = arith.addf %798, %812 : vector<8x16xf32>
    %c135 = arith.constant 135 : index
    %814 = memref.load %arg2[%c135] : memref<225xf32, #tpu.memory_space<smem>>
    %815 = vector.broadcast %814 : f32 to vector<8x16xf32>
    %816 = arith.mulf %809, %815 : vector<8x16xf32>
    %817 = arith.addf %802, %816 : vector<8x16xf32>
    %c210 = arith.constant 210 : index
    %818 = memref.load %arg2[%c210] : memref<225xf32, #tpu.memory_space<smem>>
    %819 = vector.broadcast %818 : f32 to vector<8x16xf32>
    %820 = arith.mulf %809, %819 : vector<8x16xf32>
    %821 = arith.addf %806, %820 : vector<8x16xf32>
    %822 = vector.extract_strided_slice %808 {offsets = [0, 1], sizes = [8, 16], strides = [1, 1]} : vector<8x20xf32> to vector<8x16xf32>
    %c61 = arith.constant 61 : index
    %823 = memref.load %arg2[%c61] : memref<225xf32, #tpu.memory_space<smem>>
    %824 = vector.broadcast %823 : f32 to vector<8x16xf32>
    %825 = arith.mulf %822, %824 : vector<8x16xf32>
    %826 = arith.addf %813, %825 : vector<8x16xf32>
    %c136 = arith.constant 136 : index
    %827 = memref.load %arg2[%c136] : memref<225xf32, #tpu.memory_space<smem>>
    %828 = vector.broadcast %827 : f32 to vector<8x16xf32>
    %829 = arith.mulf %822, %828 : vector<8x16xf32>
    %830 = arith.addf %817, %829 : vector<8x16xf32>
    %c211 = arith.constant 211 : index
    %831 = memref.load %arg2[%c211] : memref<225xf32, #tpu.memory_space<smem>>
    %832 = vector.broadcast %831 : f32 to vector<8x16xf32>
    %833 = arith.mulf %822, %832 : vector<8x16xf32>
    %834 = arith.addf %821, %833 : vector<8x16xf32>
    %835 = vector.extract_strided_slice %808 {offsets = [0, 2], sizes = [8, 16], strides = [1, 1]} : vector<8x20xf32> to vector<8x16xf32>
    %c62 = arith.constant 62 : index
    %836 = memref.load %arg2[%c62] : memref<225xf32, #tpu.memory_space<smem>>
    %837 = vector.broadcast %836 : f32 to vector<8x16xf32>
    %838 = arith.mulf %835, %837 : vector<8x16xf32>
    %839 = arith.addf %826, %838 : vector<8x16xf32>
    %c137 = arith.constant 137 : index
    %840 = memref.load %arg2[%c137] : memref<225xf32, #tpu.memory_space<smem>>
    %841 = vector.broadcast %840 : f32 to vector<8x16xf32>
    %842 = arith.mulf %835, %841 : vector<8x16xf32>
    %843 = arith.addf %830, %842 : vector<8x16xf32>
    %c212 = arith.constant 212 : index
    %844 = memref.load %arg2[%c212] : memref<225xf32, #tpu.memory_space<smem>>
    %845 = vector.broadcast %844 : f32 to vector<8x16xf32>
    %846 = arith.mulf %835, %845 : vector<8x16xf32>
    %847 = arith.addf %834, %846 : vector<8x16xf32>
    %848 = vector.extract_strided_slice %808 {offsets = [0, 3], sizes = [8, 16], strides = [1, 1]} : vector<8x20xf32> to vector<8x16xf32>
    %c63 = arith.constant 63 : index
    %849 = memref.load %arg2[%c63] : memref<225xf32, #tpu.memory_space<smem>>
    %850 = vector.broadcast %849 : f32 to vector<8x16xf32>
    %851 = arith.mulf %848, %850 : vector<8x16xf32>
    %852 = arith.addf %839, %851 : vector<8x16xf32>
    %c138 = arith.constant 138 : index
    %853 = memref.load %arg2[%c138] : memref<225xf32, #tpu.memory_space<smem>>
    %854 = vector.broadcast %853 : f32 to vector<8x16xf32>
    %855 = arith.mulf %848, %854 : vector<8x16xf32>
    %856 = arith.addf %843, %855 : vector<8x16xf32>
    %c213 = arith.constant 213 : index
    %857 = memref.load %arg2[%c213] : memref<225xf32, #tpu.memory_space<smem>>
    %858 = vector.broadcast %857 : f32 to vector<8x16xf32>
    %859 = arith.mulf %848, %858 : vector<8x16xf32>
    %860 = arith.addf %847, %859 : vector<8x16xf32>
    %861 = vector.extract_strided_slice %808 {offsets = [0, 4], sizes = [8, 16], strides = [1, 1]} : vector<8x20xf32> to vector<8x16xf32>
    %c64 = arith.constant 64 : index
    %862 = memref.load %arg2[%c64] : memref<225xf32, #tpu.memory_space<smem>>
    %863 = vector.broadcast %862 : f32 to vector<8x16xf32>
    %864 = arith.mulf %861, %863 : vector<8x16xf32>
    %865 = arith.addf %852, %864 : vector<8x16xf32>
    %c139 = arith.constant 139 : index
    %866 = memref.load %arg2[%c139] : memref<225xf32, #tpu.memory_space<smem>>
    %867 = vector.broadcast %866 : f32 to vector<8x16xf32>
    %868 = arith.mulf %861, %867 : vector<8x16xf32>
    %869 = arith.addf %856, %868 : vector<8x16xf32>
    %c214 = arith.constant 214 : index
    %870 = memref.load %arg2[%c214] : memref<225xf32, #tpu.memory_space<smem>>
    %871 = vector.broadcast %870 : f32 to vector<8x16xf32>
    %872 = arith.mulf %861, %871 : vector<8x16xf32>
    %873 = arith.addf %860, %872 : vector<8x16xf32>
    %c0_67 = arith.constant 0 : index
    %c0_68 = arith.constant 0 : index
    %c2_69 = arith.constant 2 : index
    %c3_70 = arith.constant 3 : index
    %c0_71 = arith.constant 0 : index
    %874 = vector.load %arg3[%c0_67, %c0_68, %c2_69, %c3_70, %c0_71] : memref<1x1x3x12x20xf32, #tpu.memory_space<vmem>>, vector<1x1x1x8x20xf32>
    %875 = vector.shape_cast %874 : vector<1x1x1x8x20xf32> to vector<8x20xf32>
    %876 = vector.extract_strided_slice %875 {offsets = [0, 0], sizes = [8, 16], strides = [1, 1]} : vector<8x20xf32> to vector<8x16xf32>
    %c65 = arith.constant 65 : index
    %877 = memref.load %arg2[%c65] : memref<225xf32, #tpu.memory_space<smem>>
    %878 = vector.broadcast %877 : f32 to vector<8x16xf32>
    %879 = arith.mulf %876, %878 : vector<8x16xf32>
    %880 = arith.addf %865, %879 : vector<8x16xf32>
    %c140 = arith.constant 140 : index
    %881 = memref.load %arg2[%c140] : memref<225xf32, #tpu.memory_space<smem>>
    %882 = vector.broadcast %881 : f32 to vector<8x16xf32>
    %883 = arith.mulf %876, %882 : vector<8x16xf32>
    %884 = arith.addf %869, %883 : vector<8x16xf32>
    %c215 = arith.constant 215 : index
    %885 = memref.load %arg2[%c215] : memref<225xf32, #tpu.memory_space<smem>>
    %886 = vector.broadcast %885 : f32 to vector<8x16xf32>
    %887 = arith.mulf %876, %886 : vector<8x16xf32>
    %888 = arith.addf %873, %887 : vector<8x16xf32>
    %889 = vector.extract_strided_slice %875 {offsets = [0, 1], sizes = [8, 16], strides = [1, 1]} : vector<8x20xf32> to vector<8x16xf32>
    %c66 = arith.constant 66 : index
    %890 = memref.load %arg2[%c66] : memref<225xf32, #tpu.memory_space<smem>>
    %891 = vector.broadcast %890 : f32 to vector<8x16xf32>
    %892 = arith.mulf %889, %891 : vector<8x16xf32>
    %893 = arith.addf %880, %892 : vector<8x16xf32>
    %c141 = arith.constant 141 : index
    %894 = memref.load %arg2[%c141] : memref<225xf32, #tpu.memory_space<smem>>
    %895 = vector.broadcast %894 : f32 to vector<8x16xf32>
    %896 = arith.mulf %889, %895 : vector<8x16xf32>
    %897 = arith.addf %884, %896 : vector<8x16xf32>
    %c216 = arith.constant 216 : index
    %898 = memref.load %arg2[%c216] : memref<225xf32, #tpu.memory_space<smem>>
    %899 = vector.broadcast %898 : f32 to vector<8x16xf32>
    %900 = arith.mulf %889, %899 : vector<8x16xf32>
    %901 = arith.addf %888, %900 : vector<8x16xf32>
    %902 = vector.extract_strided_slice %875 {offsets = [0, 2], sizes = [8, 16], strides = [1, 1]} : vector<8x20xf32> to vector<8x16xf32>
    %c67 = arith.constant 67 : index
    %903 = memref.load %arg2[%c67] : memref<225xf32, #tpu.memory_space<smem>>
    %904 = vector.broadcast %903 : f32 to vector<8x16xf32>
    %905 = arith.mulf %902, %904 : vector<8x16xf32>
    %906 = arith.addf %893, %905 : vector<8x16xf32>
    %c142 = arith.constant 142 : index
    %907 = memref.load %arg2[%c142] : memref<225xf32, #tpu.memory_space<smem>>
    %908 = vector.broadcast %907 : f32 to vector<8x16xf32>
    %909 = arith.mulf %902, %908 : vector<8x16xf32>
    %910 = arith.addf %897, %909 : vector<8x16xf32>
    %c217 = arith.constant 217 : index
    %911 = memref.load %arg2[%c217] : memref<225xf32, #tpu.memory_space<smem>>
    %912 = vector.broadcast %911 : f32 to vector<8x16xf32>
    %913 = arith.mulf %902, %912 : vector<8x16xf32>
    %914 = arith.addf %901, %913 : vector<8x16xf32>
    %915 = vector.extract_strided_slice %875 {offsets = [0, 3], sizes = [8, 16], strides = [1, 1]} : vector<8x20xf32> to vector<8x16xf32>
    %c68 = arith.constant 68 : index
    %916 = memref.load %arg2[%c68] : memref<225xf32, #tpu.memory_space<smem>>
    %917 = vector.broadcast %916 : f32 to vector<8x16xf32>
    %918 = arith.mulf %915, %917 : vector<8x16xf32>
    %919 = arith.addf %906, %918 : vector<8x16xf32>
    %c143 = arith.constant 143 : index
    %920 = memref.load %arg2[%c143] : memref<225xf32, #tpu.memory_space<smem>>
    %921 = vector.broadcast %920 : f32 to vector<8x16xf32>
    %922 = arith.mulf %915, %921 : vector<8x16xf32>
    %923 = arith.addf %910, %922 : vector<8x16xf32>
    %c218 = arith.constant 218 : index
    %924 = memref.load %arg2[%c218] : memref<225xf32, #tpu.memory_space<smem>>
    %925 = vector.broadcast %924 : f32 to vector<8x16xf32>
    %926 = arith.mulf %915, %925 : vector<8x16xf32>
    %927 = arith.addf %914, %926 : vector<8x16xf32>
    %928 = vector.extract_strided_slice %875 {offsets = [0, 4], sizes = [8, 16], strides = [1, 1]} : vector<8x20xf32> to vector<8x16xf32>
    %c69 = arith.constant 69 : index
    %929 = memref.load %arg2[%c69] : memref<225xf32, #tpu.memory_space<smem>>
    %930 = vector.broadcast %929 : f32 to vector<8x16xf32>
    %931 = arith.mulf %928, %930 : vector<8x16xf32>
    %932 = arith.addf %919, %931 : vector<8x16xf32>
    %c144 = arith.constant 144 : index
    %933 = memref.load %arg2[%c144] : memref<225xf32, #tpu.memory_space<smem>>
    %934 = vector.broadcast %933 : f32 to vector<8x16xf32>
    %935 = arith.mulf %928, %934 : vector<8x16xf32>
    %936 = arith.addf %923, %935 : vector<8x16xf32>
    %c219 = arith.constant 219 : index
    %937 = memref.load %arg2[%c219] : memref<225xf32, #tpu.memory_space<smem>>
    %938 = vector.broadcast %937 : f32 to vector<8x16xf32>
    %939 = arith.mulf %928, %938 : vector<8x16xf32>
    %940 = arith.addf %927, %939 : vector<8x16xf32>
    %c0_72 = arith.constant 0 : index
    %c0_73 = arith.constant 0 : index
    %c2_74 = arith.constant 2 : index
    %c4_75 = arith.constant 4 : index
    %c0_76 = arith.constant 0 : index
    %941 = vector.load %arg3[%c0_72, %c0_73, %c2_74, %c4_75, %c0_76] : memref<1x1x3x12x20xf32, #tpu.memory_space<vmem>>, vector<1x1x1x8x20xf32>
    %942 = vector.shape_cast %941 : vector<1x1x1x8x20xf32> to vector<8x20xf32>
    %943 = vector.extract_strided_slice %942 {offsets = [0, 0], sizes = [8, 16], strides = [1, 1]} : vector<8x20xf32> to vector<8x16xf32>
    %c70 = arith.constant 70 : index
    %944 = memref.load %arg2[%c70] : memref<225xf32, #tpu.memory_space<smem>>
    %945 = vector.broadcast %944 : f32 to vector<8x16xf32>
    %946 = arith.mulf %943, %945 : vector<8x16xf32>
    %947 = arith.addf %932, %946 : vector<8x16xf32>
    %c145 = arith.constant 145 : index
    %948 = memref.load %arg2[%c145] : memref<225xf32, #tpu.memory_space<smem>>
    %949 = vector.broadcast %948 : f32 to vector<8x16xf32>
    %950 = arith.mulf %943, %949 : vector<8x16xf32>
    %951 = arith.addf %936, %950 : vector<8x16xf32>
    %c220 = arith.constant 220 : index
    %952 = memref.load %arg2[%c220] : memref<225xf32, #tpu.memory_space<smem>>
    %953 = vector.broadcast %952 : f32 to vector<8x16xf32>
    %954 = arith.mulf %943, %953 : vector<8x16xf32>
    %955 = arith.addf %940, %954 : vector<8x16xf32>
    %956 = vector.extract_strided_slice %942 {offsets = [0, 1], sizes = [8, 16], strides = [1, 1]} : vector<8x20xf32> to vector<8x16xf32>
    %c71 = arith.constant 71 : index
    %957 = memref.load %arg2[%c71] : memref<225xf32, #tpu.memory_space<smem>>
    %958 = vector.broadcast %957 : f32 to vector<8x16xf32>
    %959 = arith.mulf %956, %958 : vector<8x16xf32>
    %960 = arith.addf %947, %959 : vector<8x16xf32>
    %c146 = arith.constant 146 : index
    %961 = memref.load %arg2[%c146] : memref<225xf32, #tpu.memory_space<smem>>
    %962 = vector.broadcast %961 : f32 to vector<8x16xf32>
    %963 = arith.mulf %956, %962 : vector<8x16xf32>
    %964 = arith.addf %951, %963 : vector<8x16xf32>
    %c221 = arith.constant 221 : index
    %965 = memref.load %arg2[%c221] : memref<225xf32, #tpu.memory_space<smem>>
    %966 = vector.broadcast %965 : f32 to vector<8x16xf32>
    %967 = arith.mulf %956, %966 : vector<8x16xf32>
    %968 = arith.addf %955, %967 : vector<8x16xf32>
    %969 = vector.extract_strided_slice %942 {offsets = [0, 2], sizes = [8, 16], strides = [1, 1]} : vector<8x20xf32> to vector<8x16xf32>
    %c72 = arith.constant 72 : index
    %970 = memref.load %arg2[%c72] : memref<225xf32, #tpu.memory_space<smem>>
    %971 = vector.broadcast %970 : f32 to vector<8x16xf32>
    %972 = arith.mulf %969, %971 : vector<8x16xf32>
    %973 = arith.addf %960, %972 : vector<8x16xf32>
    %c147 = arith.constant 147 : index
    %974 = memref.load %arg2[%c147] : memref<225xf32, #tpu.memory_space<smem>>
    %975 = vector.broadcast %974 : f32 to vector<8x16xf32>
    %976 = arith.mulf %969, %975 : vector<8x16xf32>
    %977 = arith.addf %964, %976 : vector<8x16xf32>
    %c222 = arith.constant 222 : index
    %978 = memref.load %arg2[%c222] : memref<225xf32, #tpu.memory_space<smem>>
    %979 = vector.broadcast %978 : f32 to vector<8x16xf32>
    %980 = arith.mulf %969, %979 : vector<8x16xf32>
    %981 = arith.addf %968, %980 : vector<8x16xf32>
    %982 = vector.extract_strided_slice %942 {offsets = [0, 3], sizes = [8, 16], strides = [1, 1]} : vector<8x20xf32> to vector<8x16xf32>
    %c73 = arith.constant 73 : index
    %983 = memref.load %arg2[%c73] : memref<225xf32, #tpu.memory_space<smem>>
    %984 = vector.broadcast %983 : f32 to vector<8x16xf32>
    %985 = arith.mulf %982, %984 : vector<8x16xf32>
    %986 = arith.addf %973, %985 : vector<8x16xf32>
    %c148 = arith.constant 148 : index
    %987 = memref.load %arg2[%c148] : memref<225xf32, #tpu.memory_space<smem>>
    %988 = vector.broadcast %987 : f32 to vector<8x16xf32>
    %989 = arith.mulf %982, %988 : vector<8x16xf32>
    %990 = arith.addf %977, %989 : vector<8x16xf32>
    %c223 = arith.constant 223 : index
    %991 = memref.load %arg2[%c223] : memref<225xf32, #tpu.memory_space<smem>>
    %992 = vector.broadcast %991 : f32 to vector<8x16xf32>
    %993 = arith.mulf %982, %992 : vector<8x16xf32>
    %994 = arith.addf %981, %993 : vector<8x16xf32>
    %995 = vector.extract_strided_slice %942 {offsets = [0, 4], sizes = [8, 16], strides = [1, 1]} : vector<8x20xf32> to vector<8x16xf32>
    %c74 = arith.constant 74 : index
    %996 = memref.load %arg2[%c74] : memref<225xf32, #tpu.memory_space<smem>>
    %997 = vector.broadcast %996 : f32 to vector<8x16xf32>
    %998 = arith.mulf %995, %997 : vector<8x16xf32>
    %999 = arith.addf %986, %998 : vector<8x16xf32>
    %c149 = arith.constant 149 : index
    %1000 = memref.load %arg2[%c149] : memref<225xf32, #tpu.memory_space<smem>>
    %1001 = vector.broadcast %1000 : f32 to vector<8x16xf32>
    %1002 = arith.mulf %995, %1001 : vector<8x16xf32>
    %1003 = arith.addf %990, %1002 : vector<8x16xf32>
    %c224 = arith.constant 224 : index
    %1004 = memref.load %arg2[%c224] : memref<225xf32, #tpu.memory_space<smem>>
    %1005 = vector.broadcast %1004 : f32 to vector<8x16xf32>
    %1006 = arith.mulf %995, %1005 : vector<8x16xf32>
    %1007 = arith.addf %994, %1006 : vector<8x16xf32>
    %c0_77 = arith.constant 0 : index
    %c0_78 = arith.constant 0 : index
    %c0_79 = arith.constant 0 : index
    %c0_80 = arith.constant 0 : index
    %1008 = vector.load %arg4[%c0_77, %c0_78, %c0_79, %c0_80] : memref<1x6x8x16xf32, #tpu.memory_space<vmem>>, vector<1x1x8x16xf32>
    %1009 = vector.shape_cast %1008 : vector<1x1x8x16xf32> to vector<8x16xf32>
    %1010 = vector.shape_cast %999 : vector<8x16xf32> to vector<1x1x8x16xf32>
    tpu.vector_store %arg4[%c0_77, %c0_78, %c0_79, %c0_80], %1010 {strides = array<i32>} : memref<1x6x8x16xf32, #tpu.memory_space<vmem>>, vector<1x1x8x16xf32>,
    %c0_81 = arith.constant 0 : index
    %c1_82 = arith.constant 1 : index
    %c0_83 = arith.constant 0 : index
    %c0_84 = arith.constant 0 : index
    %1011 = vector.load %arg4[%c0_81, %c1_82, %c0_83, %c0_84] : memref<1x6x8x16xf32, #tpu.memory_space<vmem>>, vector<1x1x8x16xf32>
    %1012 = vector.shape_cast %1011 : vector<1x1x8x16xf32> to vector<8x16xf32>
    %1013 = vector.shape_cast %1003 : vector<8x16xf32> to vector<1x1x8x16xf32>
    tpu.vector_store %arg4[%c0_81, %c1_82, %c0_83, %c0_84], %1013 {strides = array<i32>} : memref<1x6x8x16xf32, #tpu.memory_space<vmem>>, vector<1x1x8x16xf32>,
    %c0_85 = arith.constant 0 : index
    %c2_86 = arith.constant 2 : index
    %c0_87 = arith.constant 0 : index
    %c0_88 = arith.constant 0 : index
    %1014 = vector.load %arg4[%c0_85, %c2_86, %c0_87, %c0_88] : memref<1x6x8x16xf32, #tpu.memory_space<vmem>>, vector<1x1x8x16xf32>
    %1015 = vector.shape_cast %1014 : vector<1x1x8x16xf32> to vector<8x16xf32>
    %1016 = vector.shape_cast %1007 : vector<8x16xf32> to vector<1x1x8x16xf32>
    tpu.vector_store %arg4[%c0_85, %c2_86, %c0_87, %c0_88], %1016 {strides = array<i32>} : memref<1x6x8x16xf32, #tpu.memory_space<vmem>>, vector<1x1x8x16xf32>,
    %c0_89 = arith.constant 0 : index
    %c0_90 = arith.constant 0 : index
    %c0_91 = arith.constant 0 : index
    %c2_92 = arith.constant 2 : index
    %c2_93 = arith.constant 2 : index
    %1017 = vector.load %arg3[%c0_89, %c0_90, %c0_91, %c2_92, %c2_93] : memref<1x1x3x12x20xf32, #tpu.memory_space<vmem>>, vector<1x1x3x8x16xf32>
    %1018 = vector.shape_cast %1017 : vector<1x1x3x8x16xf32> to vector<3x8x16xf32>
    %c0_94 = arith.constant 0 : index
    %c3_95 = arith.constant 3 : index
    %c0_96 = arith.constant 0 : index
    %c0_97 = arith.constant 0 : index
    %1019 = vector.load %arg4[%c0_94, %c3_95, %c0_96, %c0_97] : memref<1x6x8x16xf32, #tpu.memory_space<vmem>>, vector<1x3x8x16xf32>
    %1020 = vector.shape_cast %1019 : vector<1x3x8x16xf32> to vector<3x8x16xf32>
    %1021 = vector.shape_cast %1018 : vector<3x8x16xf32> to vector<1x3x8x16xf32>
    tpu.vector_store %arg4[%c0_94, %c3_95, %c0_96, %c0_97], %1021 {strides = array<i32>} : memref<1x6x8x16xf32, #tpu.memory_space<vmem>>, vector<1x3x8x16xf32>,
    return
  }
  func.func @transform_0(%arg0: i32, %arg1: i32, %arg2: memref<225xf32, #tpu.memory_space<smem>>) -> (i32, i32, i32, i32, i32) {
    %c0_i32 = arith.constant 0 : i32
    %c0_i32_0 = arith.constant 0 : i32
    %c0_i32_1 = arith.constant 0 : i32
    %c0_i32_2 = arith.constant 0 : i32
    return %arg0, %arg1, %c0_i32, %c0_i32_0, %c0_i32_1 : i32, i32, i32, i32, i32
  }
  func.func @transform_1(%arg0: i32, %arg1: i32, %arg2: memref<225xf32, #tpu.memory_space<smem>>) -> (i32, i32, i32, i32) {
    %c0_i32 = arith.constant 0 : i32
    %c0_i32_0 = arith.constant 0 : i32
    %c0_i32_1 = arith.constant 0 : i32
    return %arg0, %c0_i32, %arg1, %c0_i32_0 : i32, i32, i32, i32
  }
}

</mosaic_0001>

<llo_original>
// kernel: tpu_custom_call.1
$region0: #{tpu_custom_call.1}
  #allocation0 [shape = 'u32[]', space=smem, size = 0x4, offset = 0x4, fixed_abs, tag = 'smem constant byte address 0x4 - core index']
  #allocation1 [shape = 'u32[144,128]{1,0:T(1,128)}', space=vmem, size = 0x12000, scoped, tag = 'internal scratch']
  #allocation2 [shape = 's32[1]{0}', space=sflag, size = 0x4, scoped, tag = 'scoped memory for tpu_custom_call.1']
  #allocation3 [shape = 'u8[1024]{0}', space=smem, size = 0x400, scoped, tag = 'prefetched SMEM operand 0']
  %s0 = inlined_call_operand.vmem [shape: f32[225], index: 0, kind: input, shape index: {}]
  %s1 = inlined_call_operand.vmem [shape: f32[2,2,3,12,20], index: 1, kind: input, shape index: {}]
  %s2 = inlined_call_operand.hbm [shape: f32[2,6,16,16], index: 2, kind: output, shape index: {}]
  %s3 = sld [smem:[#allocation0]]
  $region37: #{tpu_custom_call.1} parent=0
    _
  %s5 = ssub.s32 1, %s3
  %s6 = scalar_select 0, %s5, %s3
  %s7 = sshll.u32 %s0, 4
  %s8 = int_to_ptr.vmem [resolvable:$true] %s7
  %10 = dma.vmem_to_smem %s8, 32, [#allocation3], [#allocation2]
  %11 = dma.done [#allocation2], 32
  %12 = sfence
  $region1: #{tpu_custom_call.1} parent=0
    #allocation4 [shape = 'u8[49152]{0}', space=vmem, size = 0xc000, scoped, tag = 'output window, operand 0']
    #allocation5 [shape = 's32[2]{0}', space=sflag, size = 0x8, scoped, tag = 'scoped memory for tpu_custom_call.1']
    %13 = vsyncpa [#allocation5], 0
    %s14 = scalar_lea.sflag [#allocation5], 1
    %15 = vsyncpa %s14, 0
    loop: start=0, step=1, limit=6
    $region2: #{tpu_custom_call.1} parent=1 // loop_pre_header
      _
    $region3: #{tpu_custom_call.1} parent=1 // loop_header
      %s17 = sphi 0, %s21
      %p18 = scmp.ge.s32.totalorder %s17, 6
      %s24 = sphi 0, %s36
      %s25 = sphi 0, %s32
      %s26 = sphi 0, %s24
      %s27 = sphi 0, %s25
      %s28 = sphi 0, %s26
      %s29 = sphi 0, %s27
      %s41 = sphi 0, %s43
      %s44 = sphi 0, %s41
      %s45 = sphi 0, %s44
      %s61 = sphi 0, %s45
      %s69 = sphi 0, %s71
      %s72 = sphi 0, %s69
      %s73 = sphi 0, %s72
      %s89 = sphi 0, %s73
    $region4: #{tpu_custom_call.1} parent=1 // loop_header_branch
      %20 = sbr.rel (%p18) target = $region8
    $region5: #{tpu_custom_call.1} parent=1 // loop_body
      %s22 = ssub.s32 %s17, 1
      %s23 = ssub.s32 %s17, 2
      %s30 = sadd.s32 1, %s25
      %p31 = scmp.ge.s32.totalorder %s30, 2
      %s32 = scalar_select %p31, 0, %s30
      %s33 = sadd.s32 1, %s24
      %s34 = scalar_select %p31, %s33, %s24
      %p35 = scmp.ge.s32.totalorder %s34, 2
      %s36 = scalar_select %p35, 0, %s34
      %s37 = ssub.s32 %s24, %s36
      %s38 = ssub.s32 %s25, %s32
      %s39 = sor.u32 %s37, %s38
      %p40 = scmp.eq.s32.totalorder %s39, 0
      %s42 = sadd.s32 %s41, 1
      %s43 = scalar_select %p40, %s41, %s42
      %p46 = pneg %p40
      %p47 = scmp.eq.s32.totalorder %s17, 3
      %p48 = por %p46, %p47
      %p49 = scmp.ne.s32.totalorder %s41, %s44
      %p50 = scmp.eq.s32.totalorder %s17, 0
      %p51 = por %p49, %p50
      %p52 = scmp.ne.s32.totalorder %s41, %s44
      %p53 = scmp.eq.s32.totalorder %s22, 3
      %p54 = por %p52, %p53
      %p55 = scmp.ne.s32.totalorder %s44, %s45
      %p56 = scmp.eq.s32.totalorder %s22, 0
      %p57 = por %p55, %p56
      %p58 = scmp.ne.s32.totalorder %s44, %s45
      %p59 = scmp.eq.s32.totalorder %s23, 3
      %p60 = por %p58, %p59
      %p62 = scmp.ne.s32.totalorder %s45, %s61
      %p63 = scmp.eq.s32.totalorder %s23, 0
      %p64 = por %p62, %p63
      %s65 = ssub.s32 %s24, %s36
      %s66 = ssub.s32 %s25, %s32
      %s67 = sor.u32 %s65, %s66
      %p68 = scmp.eq.s32.totalorder %s67, 0
      %s70 = sadd.s32 %s69, 1
      %s71 = scalar_select %p68, %s69, %s70
      %p74 = pneg %p68
      %p75 = scmp.eq.s32.totalorder %s17, 3
      %p76 = por %p74, %p75
      %p77 = scmp.ne.s32.totalorder %s69, %s72
      %p78 = scmp.eq.s32.totalorder %s17, 0
      %p79 = por %p77, %p78
      %p80 = scmp.ne.s32.totalorder %s69, %s72
      %p81 = scmp.eq.s32.totalorder %s22, 3
      %p82 = por %p80, %p81
      %p83 = scmp.ne.s32.totalorder %s72, %s73
      %p84 = scmp.eq.s32.totalorder %s22, 0
      %p85 = por %p83, %p84
      %p86 = scmp.ne.s32.totalorder %s72, %s73
      %p87 = scmp.eq.s32.totalorder %s23, 3
      %p88 = por %p86, %p87
      %p90 = scmp.ne.s32.totalorder %s73, %s89
      %p91 = scmp.eq.s32.totalorder %s23, 0
      %p92 = por %p90, %p91
      %p93 = scmp.le.s32.totalorder 1, %s17
      %p94 = scmp.lt.s32.totalorder %s17, 5
      %p95 = pnand %p93, %p94
      %p96 = pneg %p95
      // Predicated region
      $region9: #{tpu_custom_call.1} parent=5 // pred_check
        _
      $region10: #{tpu_custom_call.1} parent=5 // pred_check_branch
        %98 = sbr.rel (%p95) target = $region12
      $region11: #{tpu_custom_call.1} parent=5 // pred_region
        %s99 = ssub.s32 %s17, 1
      $region12: #{tpu_custom_call.1} parent=5 // pred_fallthru
        _
      %p100 = scmp.lt.s32.totalorder %s17, 4
      // Predicated region
      $region13: #{tpu_custom_call.1} parent=5 // pred_check
        %p101 = pneg %p100
      $region14: #{tpu_custom_call.1} parent=5 // pred_check_branch
        %103 = sbr.rel (%p101) target = $region16
      $region15: #{tpu_custom_call.1} parent=5 // pred_region
        // Predicated region
        $region17: #{tpu_custom_call.1} parent=15 // pred_check
          %p104 = pneg %p51
        $region18: #{tpu_custom_call.1} parent=15 // pred_check_branch
          %106 = sbr.rel (%p104) target = $region20
        $region19: #{tpu_custom_call.1} parent=15 // pred_region
          %p107 = scmp.lt.s32.totalorder %s24, 1
          %s108 = scalar_select %p107, %s24, 1
          %p109 = scmp.lt.s32.totalorder %s25, 1
          %s110 = scalar_select %p109, %s25, 1
          %s111 = smul.addr %s110, 6
          %s112 = smul.addr %s108, 12
          %s113 = sadd.s32 %s111, %s112
          %s114 = smul.addr %s113, 8
          %s115 = scalar_lea.vmem %s1, %s114
        $region20: #{tpu_custom_call.1} parent=15 // pred_fallthru
          _
      $region16: #{tpu_custom_call.1} parent=5 // pred_fallthru
        _
      %p116 = scmp.le.s32.totalorder 1, %s17
      %p117 = scmp.lt.s32.totalorder %s17, 5
      %p118 = pnand %p116, %p117
      %p119 = pneg %p118
      // Predicated region
      $region21: #{tpu_custom_call.1} parent=5 // pred_check
        _
      $region22: #{tpu_custom_call.1} parent=5 // pred_check_branch
        %121 = sbr.rel (%p118) target = $region24
      $region23: #{tpu_custom_call.1} parent=5 // pred_region
        %s122 = ssub.s32 %s17, 1
        %p123 = scmp.lt.s32.totalorder %s26, 1
        %s124 = scalar_select %p123, %s26, 1
        %p125 = scmp.lt.s32.totalorder %s27, 1
        %s126 = scalar_select %p125, %s27, 1
        %s127 = smul.addr %s126, 6
        %s128 = smul.addr %s124, 12
        %s129 = sadd.s32 %s127, %s128
        %s130 = smul.addr %s129, 8
        %s131 = scalar_lea.vmem %s1, %s130
        %p132 = pneg %p57
        %p133 = pneg %p54
        %p134 = pneg %p85
        %p135 = pneg %p82
        %s136 = sand.u32 %s72, 1
        %s137 = scalar_lea.sflag [#allocation5], %s136
        %s138 = sand.u32 %s72, 1
        %s139 = smul.addr %s138, 48
        %s140 = scalar_lea.vmem [#allocation4], %s139
        %p141 = scmp.lt.s32.totalorder %s26, 1
        %s142 = scalar_select %p141, %s26, 1
        %p143 = scmp.lt.s32.totalorder %s27, 1
        %s144 = scalar_select %p143, %s27, 1
        %s145 = smul.addr %s144, 6
        %s146 = smul.addr %s142, 12
        %s147 = sadd.s32 %s145, %s146
        %s148 = smul.addr %s147, 8
        %s149 = scalar_lea.vmem %s1, %s148
        %v150 = vld [vmem:[%s149] sm:$0xff]
        %s151 = sld [smem:[#allocation3]]
        %v152 = vstv %s151
        %v153 = vmul.f32 %v150, %v152
        %v154 = vadd.f32 %v153, 0.0
        %s155 = sld [smem:[#allocation3 + $0x4b]]
        %v156 = vstv %s155
        %v157 = vmul.f32 %v150, %v156
        %v158 = vadd.f32 %v157, 0.0
        %s159 = sld [smem:[#allocation3 + $0x96]]
        %v160 = vstv %s159
        %v161 = vmul.f32 %v150, %v160
        %v162 = vadd.f32 %v161, 0.0
        %s163 = sld [smem:[#allocation3 + $0x1]]
        %v164 = vstv %s163
        %v165 = vmul.f32 %v150, %v164
        %167 = vrot.lane.b32.xlu0 %v165, 127
        %v168 = vpop.permute.xlu0 %167
        %v170 = vadd.f32 %v154, %v168
        %s171 = sld [smem:[#allocation3 + $0x4c]]
        %v172 = vstv %s171
        %v173 = vmul.f32 %v150, %v172
        %175 = vrot.lane.b32.xlu0 %v173, 127
        %v176 = vpop.permute.xlu0 %175
        %v178 = vadd.f32 %v158, %v176
        %s179 = sld [smem:[#allocation3 + $0x97]]
        %v180 = vstv %s179
        %v181 = vmul.f32 %v150, %v180
        %183 = vrot.lane.b32.xlu0 %v181, 127
        %v184 = vpop.permute.xlu0 %183
        %v186 = vadd.f32 %v162, %v184
        %s187 = sld [smem:[#allocation3 + $0x2]]
        %v188 = vstv %s187
        %v189 = vmul.f32 %v150, %v188
        %191 = vrot.lane.b32.xlu0 %v189, 126
        %v192 = vpop.permute.xlu0 %191
        %v194 = vadd.f32 %v170, %v192
        %s195 = sld [smem:[#allocation3 + $0x4d]]
        %v196 = vstv %s195
        %v197 = vmul.f32 %v150, %v196
        %199 = vrot.lane.b32.xlu0 %v197, 126
        %v200 = vpop.permute.xlu0 %199
        %v202 = vadd.f32 %v178, %v200
        %s203 = sld [smem:[#allocation3 + $0x98]]
        %v204 = vstv %s203
        %v205 = vmul.f32 %v150, %v204
        %207 = vrot.lane.b32.xlu0 %v205, 126
        %v208 = vpop.permute.xlu0 %207
        %v210 = vadd.f32 %v186, %v208
        %s211 = sld [smem:[#allocation3 + $0x3]]
        %v212 = vstv %s211
        %v213 = vmul.f32 %v150, %v212
        %215 = vrot.lane.b32.xlu0 %v213, 125
        %v216 = vpop.permute.xlu0 %215
        %v218 = vadd.f32 %v194, %v216
        %s219 = sld [smem:[#allocation3 + $0x4e]]
        %v220 = vstv %s219
        %v221 = vmul.f32 %v150, %v220
        %223 = vrot.lane.b32.xlu0 %v221, 125
        %v224 = vpop.permute.xlu0 %223
        %v226 = vadd.f32 %v202, %v224
        %s227 = sld [smem:[#allocation3 + $0x99]]
        %v228 = vstv %s227
        %v229 = vmul.f32 %v150, %v228
        %231 = vrot.lane.b32.xlu0 %v229, 125
        %v232 = vpop.permute.xlu0 %231
        %v234 = vadd.f32 %v210, %v232
        %s235 = sld [smem:[#allocation3 + $0x4]]
        %v236 = vstv %s235
        %v237 = vmul.f32 %v150, %v236
        %239 = vrot.lane.b32.xlu0 %v237, 124
        %v240 = vpop.permute.xlu0 %239
        %v242 = vadd.f32 %v218, %v240
        %s243 = sld [smem:[#allocation3 + $0x4f]]
        %v244 = vstv %s243
        %v245 = vmul.f32 %v150, %v244
        %247 = vrot.lane.b32.xlu0 %v245, 124
        %v248 = vpop.permute.xlu0 %247
        %v250 = vadd.f32 %v226, %v248
        %s251 = sld [smem:[#allocation3 + $0x9a]]
        %v252 = vstv %s251
        %v253 = vmul.f32 %v150, %v252
        %255 = vrot.lane.b32.xlu0 %v253, 124
        %v256 = vpop.permute.xlu0 %255
        %v258 = vadd.f32 %v234, %v256
        %v259 = vld [vmem:[%s149 + $0x1] sm:$0xff]
        %s260 = sld [smem:[#allocation3 + $0x5]]
        %v261 = vstv %s260
        %v262 = vmul.f32 %v259, %v261
        %v263 = vadd.f32 %v242, %v262
        %s264 = sld [smem:[#allocation3 + $0x50]]
        %v265 = vstv %s264
        %v266 = vmul.f32 %v259, %v265
        %v267 = vadd.f32 %v250, %v266
        %s268 = sld [smem:[#allocation3 + $0x9b]]
        %v269 = vstv %s268
        %v270 = vmul.f32 %v259, %v269
        %v271 = vadd.f32 %v258, %v270
        %s272 = sld [smem:[#allocation3 + $0x6]]
        %v273 = vstv %s272
        %v274 = vmul.f32 %v259, %v273
        %276 = vrot.lane.b32.xlu0 %v274, 127
        %v277 = vpop.permute.xlu0 %276
        %v279 = vadd.f32 %v263, %v277
        %s280 = sld [smem:[#allocation3 + $0x51]]
        %v281 = vstv %s280
        %v282 = vmul.f32 %v259, %v281
        %284 = vrot.lane.b32.xlu0 %v282, 127
        %v285 = vpop.permute.xlu0 %284
        %v287 = vadd.f32 %v267, %v285
        %s288 = sld [smem:[#allocation3 + $0x9c]]
        %v289 = vstv %s288
        %v290 = vmul.f32 %v259, %v289
        %292 = vrot.lane.b32.xlu0 %v290, 127
        %v293 = vpop.permute.xlu0 %292
        %v295 = vadd.f32 %v271, %v293
        %s296 = sld [smem:[#allocation3 + $0x7]]
        %v297 = vstv %s296
        %v298 = vmul.f32 %v259, %v297
        %300 = vrot.lane.b32.xlu0 %v298, 126
        %v301 = vpop.permute.xlu0 %300
        %v303 = vadd.f32 %v279, %v301
        %s304 = sld [smem:[#allocation3 + $0x52]]
        %v305 = vstv %s304
        %v306 = vmul.f32 %v259, %v305
        %308 = vrot.lane.b32.xlu0 %v306, 126
        %v309 = vpop.permute.xlu0 %308
        %v311 = vadd.f32 %v287, %v309
        %s312 = sld [smem:[#allocation3 + $0x9d]]
        %v313 = vstv %s312
        %v314 = vmul.f32 %v259, %v313
        %316 = vrot.lane.b32.xlu0 %v314, 126
        %v317 = vpop.permute.xlu0 %316
        %v319 = vadd.f32 %v295, %v317
        %s320 = sld [smem:[#allocation3 + $0x8]]
        %v321 = vstv %s320
        %v322 = vmul.f32 %v259, %v321
        %324 = vrot.lane.b32.xlu0 %v322, 125
        %v325 = vpop.permute.xlu0 %324
        %v327 = vadd.f32 %v303, %v325
        %s328 = sld [smem:[#allocation3 + $0x53]]
        %v329 = vstv %s328
        %v330 = vmul.f32 %v259, %v329
        %332 = vrot.lane.b32.xlu0 %v330, 125
        %v333 = vpop.permute.xlu0 %332
        %v335 = vadd.f32 %v311, %v333
        %s336 = sld [smem:[#allocation3 + $0x9e]]
        %v337 = vstv %s336
        %v338 = vmul.f32 %v259, %v337
        %340 = vrot.lane.b32.xlu0 %v338, 125
        %v341 = vpop.permute.xlu0 %340
        %v343 = vadd.f32 %v319, %v341
        %s344 = sld [smem:[#allocation3 + $0x9]]
        %v345 = vstv %s344
        %v346 = vmul.f32 %v259, %v345
        %348 = vrot.lane.b32.xlu0 %v346, 124
        %v349 = vpop.permute.xlu0 %348
        %v351 = vadd.f32 %v327, %v349
        %s352 = sld [smem:[#allocation3 + $0x54]]
        %v353 = vstv %s352
        %v354 = vmul.f32 %v259, %v353
        %356 = vrot.lane.b32.xlu0 %v354, 124
        %v357 = vpop.permute.xlu0 %356
        %v359 = vadd.f32 %v335, %v357
        %s360 = sld [smem:[#allocation3 + $0x9f]]
        %v361 = vstv %s360
        %v362 = vmul.f32 %v259, %v361
        %364 = vrot.lane.b32.xlu0 %v362, 124
        %v365 = vpop.permute.xlu0 %364
        %v367 = vadd.f32 %v343, %v365
        %v368 = vld [vmem:[%s149 + $0x2] sm:$0xff]
        %s369 = sld [smem:[#allocation3 + $0xa]]
        %v370 = vstv %s369
        %v371 = vmul.f32 %v368, %v370
        %v372 = vadd.f32 %v351, %v371
        %s373 = sld [smem:[#allocation3 + $0x55]]
        %v374 = vstv %s373
        %v375 = vmul.f32 %v368, %v374
        %v376 = vadd.f32 %v359, %v375
        %s377 = sld [smem:[#allocation3 + $0xa0]]
        %v378 = vstv %s377
        %v379 = vmul.f32 %v368, %v378
        %v380 = vadd.f32 %v367, %v379
        %s381 = sld [smem:[#allocation3 + $0xb]]
        %v382 = vstv %s381
        %v383 = vmul.f32 %v368, %v382
        %385 = vrot.lane.b32.xlu0 %v383, 127
        %v386 = vpop.permute.xlu0 %385
        %v388 = vadd.f32 %v372, %v386
        %s389 = sld [smem:[#allocation3 + $0x56]]
        %v390 = vstv %s389
        %v391 = vmul.f32 %v368, %v390
        %393 = vrot.lane.b32.xlu0 %v391, 127
        %v394 = vpop.permute.xlu0 %393
        %v396 = vadd.f32 %v376, %v394
        %s397 = sld [smem:[#allocation3 + $0xa1]]
        %v398 = vstv %s397
        %v399 = vmul.f32 %v368, %v398
        %401 = vrot.lane.b32.xlu0 %v399, 127
        %v402 = vpop.permute.xlu0 %401
        %v404 = vadd.f32 %v380, %v402
        %s405 = sld [smem:[#allocation3 + $0xc]]
        %v406 = vstv %s405
        %v407 = vmul.f32 %v368, %v406
        %409 = vrot.lane.b32.xlu0 %v407, 126
        %v410 = vpop.permute.xlu0 %409
        %v412 = vadd.f32 %v388, %v410
        %s413 = sld [smem:[#allocation3 + $0x57]]
        %v414 = vstv %s413
        %v415 = vmul.f32 %v368, %v414
        %417 = vrot.lane.b32.xlu0 %v415, 126
        %v418 = vpop.permute.xlu0 %417
        %v420 = vadd.f32 %v396, %v418
        %s421 = sld [smem:[#allocation3 + $0xa2]]
        %v422 = vstv %s421
        %v423 = vmul.f32 %v368, %v422
        %425 = vrot.lane.b32.xlu0 %v423, 126
        %v426 = vpop.permute.xlu0 %425
        %v428 = vadd.f32 %v404, %v426
        %s429 = sld [smem:[#allocation3 + $0xd]]
        %v430 = vstv %s429
        %v431 = vmul.f32 %v368, %v430
        %433 = vrot.lane.b32.xlu0 %v431, 125
        %v434 = vpop.permute.xlu0 %433
        %v436 = vadd.f32 %v412, %v434
        %s437 = sld [smem:[#allocation3 + $0x58]]
        %v438 = vstv %s437
        %v439 = vmul.f32 %v368, %v438
        %441 = vrot.lane.b32.xlu0 %v439, 125
        %v442 = vpop.permute.xlu0 %441
        %v444 = vadd.f32 %v420, %v442
        %s445 = sld [smem:[#allocation3 + $0xa3]]
        %v446 = vstv %s445
        %v447 = vmul.f32 %v368, %v446
        %449 = vrot.lane.b32.xlu0 %v447, 125
        %v450 = vpop.permute.xlu0 %449
        %v452 = vadd.f32 %v428, %v450
        %s453 = sld [smem:[#allocation3 + $0xe]]
        %v454 = vstv %s453
        %v455 = vmul.f32 %v368, %v454
        %457 = vrot.lane.b32.xlu0 %v455, 124
        %v458 = vpop.permute.xlu0 %457
        %v460 = vadd.f32 %v436, %v458
        %s461 = sld [smem:[#allocation3 + $0x59]]
        %v462 = vstv %s461
        %v463 = vmul.f32 %v368, %v462
        %465 = vrot.lane.b32.xlu0 %v463, 124
        %v466 = vpop.permute.xlu0 %465
        %v468 = vadd.f32 %v444, %v466
        %s469 = sld [smem:[#allocation3 + $0xa4]]
        %v470 = vstv %s469
        %v471 = vmul.f32 %v368, %v470
        %473 = vrot.lane.b32.xlu0 %v471, 124
        %v474 = vpop.permute.xlu0 %473
        %v476 = vadd.f32 %v452, %v474
        %v477 = vld [vmem:[%s149 + $0x3] sm:$0xff]
        %s478 = sld [smem:[#allocation3 + $0xf]]
        %v479 = vstv %s478
        %v480 = vmul.f32 %v477, %v479
        %v481 = vadd.f32 %v460, %v480
        %s482 = sld [smem:[#allocation3 + $0x5a]]
        %v483 = vstv %s482
        %v484 = vmul.f32 %v477, %v483
        %v485 = vadd.f32 %v468, %v484
        %s486 = sld [smem:[#allocation3 + $0xa5]]
        %v487 = vstv %s486
        %v488 = vmul.f32 %v477, %v487
        %v489 = vadd.f32 %v476, %v488
        %s490 = sld [smem:[#allocation3 + $0x10]]
        %v491 = vstv %s490
        %v492 = vmul.f32 %v477, %v491
        %494 = vrot.lane.b32.xlu0 %v492, 127
        %v495 = vpop.permute.xlu0 %494
        %v497 = vadd.f32 %v481, %v495
        %s498 = sld [smem:[#allocation3 + $0x5b]]
        %v499 = vstv %s498
        %v500 = vmul.f32 %v477, %v499
        %502 = vrot.lane.b32.xlu0 %v500, 127
        %v503 = vpop.permute.xlu0 %502
        %v505 = vadd.f32 %v485, %v503
        %s506 = sld [smem:[#allocation3 + $0xa6]]
        %v507 = vstv %s506
        %v508 = vmul.f32 %v477, %v507
        %510 = vrot.lane.b32.xlu0 %v508, 127
        %v511 = vpop.permute.xlu0 %510
        %v513 = vadd.f32 %v489, %v511
        %s514 = sld [smem:[#allocation3 + $0x11]]
        %v515 = vstv %s514
        %v516 = vmul.f32 %v477, %v515
        %518 = vrot.lane.b32.xlu0 %v516, 126
        %v519 = vpop.permute.xlu0 %518
        %v521 = vadd.f32 %v497, %v519
        %s522 = sld [smem:[#allocation3 + $0x5c]]
        %v523 = vstv %s522
        %v524 = vmul.f32 %v477, %v523
        %526 = vrot.lane.b32.xlu0 %v524, 126
        %v527 = vpop.permute.xlu0 %526
        %v529 = vadd.f32 %v505, %v527
        %s530 = sld [smem:[#allocation3 + $0xa7]]
        %v531 = vstv %s530
        %v532 = vmul.f32 %v477, %v531
        %534 = vrot.lane.b32.xlu0 %v532, 126
        %v535 = vpop.permute.xlu0 %534
        %v537 = vadd.f32 %v513, %v535
        %s538 = sld [smem:[#allocation3 + $0x12]]
        %v539 = vstv %s538
        %v540 = vmul.f32 %v477, %v539
        %542 = vrot.lane.b32.xlu0 %v540, 125
        %v543 = vpop.permute.xlu0 %542
        %v545 = vadd.f32 %v521, %v543
        %s546 = sld [smem:[#allocation3 + $0x5d]]
        %v547 = vstv %s546
        %v548 = vmul.f32 %v477, %v547
        %550 = vrot.lane.b32.xlu0 %v548, 125
        %v551 = vpop.permute.xlu0 %550
        %v553 = vadd.f32 %v529, %v551
        %s554 = sld [smem:[#allocation3 + $0xa8]]
        %v555 = vstv %s554
        %v556 = vmul.f32 %v477, %v555
        %558 = vrot.lane.b32.xlu0 %v556, 125
        %v559 = vpop.permute.xlu0 %558
        %v561 = vadd.f32 %v537, %v559
        %s562 = sld [smem:[#allocation3 + $0x13]]
        %v563 = vstv %s562
        %v564 = vmul.f32 %v477, %v563
        %566 = vrot.lane.b32.xlu0 %v564, 124
        %v567 = vpop.permute.xlu0 %566
        %v569 = vadd.f32 %v545, %v567
        %s570 = sld [smem:[#allocation3 + $0x5e]]
        %v571 = vstv %s570
        %v572 = vmul.f32 %v477, %v571
        %574 = vrot.lane.b32.xlu0 %v572, 124
        %v575 = vpop.permute.xlu0 %574
        %v577 = vadd.f32 %v553, %v575
        %s578 = sld [smem:[#allocation3 + $0xa9]]
        %v579 = vstv %s578
        %v580 = vmul.f32 %v477, %v579
        %582 = vrot.lane.b32.xlu0 %v580, 124
        %v583 = vpop.permute.xlu0 %582
        %v585 = vadd.f32 %v561, %v583
        %v586 = vld [vmem:[%s149 + $0x4] sm:$0xff]
        %s587 = sld [smem:[#allocation3 + $0x14]]
        %v588 = vstv %s587
        %v589 = vmul.f32 %v586, %v588
        %v590 = vadd.f32 %v569, %v589
        %s591 = sld [smem:[#allocation3 + $0x5f]]
        %v592 = vstv %s591
        %v593 = vmul.f32 %v586, %v592
        %v594 = vadd.f32 %v577, %v593
        %s595 = sld [smem:[#allocation3 + $0xaa]]
        %v596 = vstv %s595
        %v597 = vmul.f32 %v586, %v596
        %v598 = vadd.f32 %v585, %v597
        %s599 = sld [smem:[#allocation3 + $0x15]]
        %v600 = vstv %s599
        %v601 = vmul.f32 %v586, %v600
        %603 = vrot.lane.b32.xlu0 %v601, 127
        %v604 = vpop.permute.xlu0 %603
        %v606 = vadd.f32 %v590, %v604
        %s607 = sld [smem:[#allocation3 + $0x60]]
        %v608 = vstv %s607
        %v609 = vmul.f32 %v586, %v608
        %611 = vrot.lane.b32.xlu0 %v609, 127
        %v612 = vpop.permute.xlu0 %611
        %v614 = vadd.f32 %v594, %v612
        %s615 = sld [smem:[#allocation3 + $0xab]]
        %v616 = vstv %s615
        %v617 = vmul.f32 %v586, %v616
        %619 = vrot.lane.b32.xlu0 %v617, 127
        %v620 = vpop.permute.xlu0 %619
        %v622 = vadd.f32 %v598, %v620
        %s623 = sld [smem:[#allocation3 + $0x16]]
        %v624 = vstv %s623
        %v625 = vmul.f32 %v586, %v624
        %627 = vrot.lane.b32.xlu0 %v625, 126
        %v628 = vpop.permute.xlu0 %627
        %v630 = vadd.f32 %v606, %v628
        %s631 = sld [smem:[#allocation3 + $0x61]]
        %v632 = vstv %s631
        %v633 = vmul.f32 %v586, %v632
        %635 = vrot.lane.b32.xlu0 %v633, 126
        %v636 = vpop.permute.xlu0 %635
        %v638 = vadd.f32 %v614, %v636
        %s639 = sld [smem:[#allocation3 + $0xac]]
        %v640 = vstv %s639
        %v641 = vmul.f32 %v586, %v640
        %643 = vrot.lane.b32.xlu0 %v641, 126
        %v644 = vpop.permute.xlu0 %643
        %v646 = vadd.f32 %v622, %v644
        %s647 = sld [smem:[#allocation3 + $0x17]]
        %v648 = vstv %s647
        %v649 = vmul.f32 %v586, %v648
        %651 = vrot.lane.b32.xlu0 %v649, 125
        %v652 = vpop.permute.xlu0 %651
        %v654 = vadd.f32 %v630, %v652
        %s655 = sld [smem:[#allocation3 + $0x62]]
        %v656 = vstv %s655
        %v657 = vmul.f32 %v586, %v656
        %659 = vrot.lane.b32.xlu0 %v657, 125
        %v660 = vpop.permute.xlu0 %659
        %v662 = vadd.f32 %v638, %v660
        %s663 = sld [smem:[#allocation3 + $0xad]]
        %v664 = vstv %s663
        %v665 = vmul.f32 %v586, %v664
        %667 = vrot.lane.b32.xlu0 %v665, 125
        %v668 = vpop.permute.xlu0 %667
        %v670 = vadd.f32 %v646, %v668
        %s671 = sld [smem:[#allocation3 + $0x18]]
        %v672 = vstv %s671
        %v673 = vmul.f32 %v586, %v672
        %675 = vrot.lane.b32.xlu0 %v673, 124
        %v676 = vpop.permute.xlu0 %675
        %v678 = vadd.f32 %v654, %v676
        %s679 = sld [smem:[#allocation3 + $0x63]]
        %v680 = vstv %s679
        %v681 = vmul.f32 %v586, %v680
        %683 = vrot.lane.b32.xlu0 %v681, 124
        %v684 = vpop.permute.xlu0 %683
        %v686 = vadd.f32 %v662, %v684
        %s687 = sld [smem:[#allocation3 + $0xae]]
        %v688 = vstv %s687
        %v689 = vmul.f32 %v586, %v688
        %691 = vrot.lane.b32.xlu0 %v689, 124
        %v692 = vpop.permute.xlu0 %691
        %v694 = vadd.f32 %v670, %v692
        %s695 = scalar_lea.vmem %s149, 16
        %v696 = vld [vmem:[%s695] sm:$0xff]
        %s697 = sld [smem:[#allocation3 + $0x19]]
        %v698 = vstv %s697
        %v699 = vmul.f32 %v696, %v698
        %v700 = vadd.f32 %v678, %v699
        %s701 = sld [smem:[#allocation3 + $0x64]]
        %v702 = vstv %s701
        %v703 = vmul.f32 %v696, %v702
        %v704 = vadd.f32 %v686, %v703
        %s705 = sld [smem:[#allocation3 + $0xaf]]
        %v706 = vstv %s705
        %v707 = vmul.f32 %v696, %v706
        %v708 = vadd.f32 %v694, %v707
        %s709 = sld [smem:[#allocation3 + $0x1a]]
        %v710 = vstv %s709
        %v711 = vmul.f32 %v696, %v710
        %713 = vrot.lane.b32.xlu0 %v711, 127
        %v714 = vpop.permute.xlu0 %713
        %v716 = vadd.f32 %v700, %v714
        %s717 = sld [smem:[#allocation3 + $0x65]]
        %v718 = vstv %s717
        %v719 = vmul.f32 %v696, %v718
        %721 = vrot.lane.b32.xlu0 %v719, 127
        %v722 = vpop.permute.xlu0 %721
        %v724 = vadd.f32 %v704, %v722
        %s725 = sld [smem:[#allocation3 + $0xb0]]
        %v726 = vstv %s725
        %v727 = vmul.f32 %v696, %v726
        %729 = vrot.lane.b32.xlu0 %v727, 127
        %v730 = vpop.permute.xlu0 %729
        %v732 = vadd.f32 %v708, %v730
        %s733 = sld [smem:[#allocation3 + $0x1b]]
        %v734 = vstv %s733
        %v735 = vmul.f32 %v696, %v734
        %737 = vrot.lane.b32.xlu0 %v735, 126
        %v738 = vpop.permute.xlu0 %737
        %v740 = vadd.f32 %v716, %v738
        %s741 = sld [smem:[#allocation3 + $0x66]]
        %v742 = vstv %s741
        %v743 = vmul.f32 %v696, %v742
        %745 = vrot.lane.b32.xlu0 %v743, 126
        %v746 = vpop.permute.xlu0 %745
        %v748 = vadd.f32 %v724, %v746
        %s749 = sld [smem:[#allocation3 + $0xb1]]
        %v750 = vstv %s749
        %v751 = vmul.f32 %v696, %v750
        %753 = vrot.lane.b32.xlu0 %v751, 126
        %v754 = vpop.permute.xlu0 %753
        %v756 = vadd.f32 %v732, %v754
        %s757 = sld [smem:[#allocation3 + $0x1c]]
        %v758 = vstv %s757
        %v759 = vmul.f32 %v696, %v758
        %761 = vrot.lane.b32.xlu0 %v759, 125
        %v762 = vpop.permute.xlu0 %761
        %v764 = vadd.f32 %v740, %v762
        %s765 = sld [smem:[#allocation3 + $0x67]]
        %v766 = vstv %s765
        %v767 = vmul.f32 %v696, %v766
        %769 = vrot.lane.b32.xlu0 %v767, 125
        %v770 = vpop.permute.xlu0 %769
        %v772 = vadd.f32 %v748, %v770
        %s773 = sld [smem:[#allocation3 + $0xb2]]
        %v774 = vstv %s773
        %v775 = vmul.f32 %v696, %v774
        %777 = vrot.lane.b32.xlu0 %v775, 125
        %v778 = vpop.permute.xlu0 %777
        %v780 = vadd.f32 %v756, %v778
        %s781 = sld [smem:[#allocation3 + $0x1d]]
        %v782 = vstv %s781
        %v783 = vmul.f32 %v696, %v782
        %785 = vrot.lane.b32.xlu0 %v783, 124
        %v786 = vpop.permute.xlu0 %785
        %v788 = vadd.f32 %v764, %v786
        %s789 = sld [smem:[#allocation3 + $0x68]]
        %v790 = vstv %s789
        %v791 = vmul.f32 %v696, %v790
        %793 = vrot.lane.b32.xlu0 %v791, 124
        %v794 = vpop.permute.xlu0 %793
        %v796 = vadd.f32 %v772, %v794
        %s797 = sld [smem:[#allocation3 + $0xb3]]
        %v798 = vstv %s797
        %v799 = vmul.f32 %v696, %v798
        %801 = vrot.lane.b32.xlu0 %v799, 124
        %v802 = vpop.permute.xlu0 %801
        %v804 = vadd.f32 %v780, %v802
        %v805 = vld [vmem:[%s695 + $0x1] sm:$0xff]
        %s806 = sld [smem:[#allocation3 + $0x1e]]
        %v807 = vstv %s806
        %v808 = vmul.f32 %v805, %v807
        %v809 = vadd.f32 %v788, %v808
        %s810 = sld [smem:[#allocation3 + $0x69]]
        %v811 = vstv %s810
        %v812 = vmul.f32 %v805, %v811
        %v813 = vadd.f32 %v796, %v812
        %s814 = sld [smem:[#allocation3 + $0xb4]]
        %v815 = vstv %s814
        %v816 = vmul.f32 %v805, %v815
        %v817 = vadd.f32 %v804, %v816
        %s818 = sld [smem:[#allocation3 + $0x1f]]
        %v819 = vstv %s818
        %v820 = vmul.f32 %v805, %v819
        %822 = vrot.lane.b32.xlu0 %v820, 127
        %v823 = vpop.permute.xlu0 %822
        %v825 = vadd.f32 %v809, %v823
        %s826 = sld [smem:[#allocation3 + $0x6a]]
        %v827 = vstv %s826
        %v828 = vmul.f32 %v805, %v827
        %830 = vrot.lane.b32.xlu0 %v828, 127
        %v831 = vpop.permute.xlu0 %830
        %v833 = vadd.f32 %v813, %v831
        %s834 = sld [smem:[#allocation3 + $0xb5]]
        %v835 = vstv %s834
        %v836 = vmul.f32 %v805, %v835
        %838 = vrot.lane.b32.xlu0 %v836, 127
        %v839 = vpop.permute.xlu0 %838
        %v841 = vadd.f32 %v817, %v839
        %s842 = sld [smem:[#allocation3 + $0x20]]
        %v843 = vstv %s842
        %v844 = vmul.f32 %v805, %v843
        %846 = vrot.lane.b32.xlu0 %v844, 126
        %v847 = vpop.permute.xlu0 %846
        %v849 = vadd.f32 %v825, %v847
        %s850 = sld [smem:[#allocation3 + $0x6b]]
        %v851 = vstv %s850
        %v852 = vmul.f32 %v805, %v851
        %854 = vrot.lane.b32.xlu0 %v852, 126
        %v855 = vpop.permute.xlu0 %854
        %v857 = vadd.f32 %v833, %v855
        %s858 = sld [smem:[#allocation3 + $0xb6]]
        %v859 = vstv %s858
        %v860 = vmul.f32 %v805, %v859
        %862 = vrot.lane.b32.xlu0 %v860, 126
        %v863 = vpop.permute.xlu0 %862
        %v865 = vadd.f32 %v841, %v863
        %s866 = sld [smem:[#allocation3 + $0x21]]
        %v867 = vstv %s866
        %v868 = vmul.f32 %v805, %v867
        %870 = vrot.lane.b32.xlu0 %v868, 125
        %v871 = vpop.permute.xlu0 %870
        %v873 = vadd.f32 %v849, %v871
        %s874 = sld [smem:[#allocation3 + $0x6c]]
        %v875 = vstv %s874
        %v876 = vmul.f32 %v805, %v875
        %878 = vrot.lane.b32.xlu0 %v876, 125
        %v879 = vpop.permute.xlu0 %878
        %v881 = vadd.f32 %v857, %v879
        %s882 = sld [smem:[#allocation3 + $0xb7]]
        %v883 = vstv %s882
        %v884 = vmul.f32 %v805, %v883
        %886 = vrot.lane.b32.xlu0 %v884, 125
        %v887 = vpop.permute.xlu0 %886
        %v889 = vadd.f32 %v865, %v887
        %s890 = sld [smem:[#allocation3 + $0x22]]
        %v891 = vstv %s890
        %v892 = vmul.f32 %v805, %v891
        %894 = vrot.lane.b32.xlu0 %v892, 124
        %v895 = vpop.permute.xlu0 %894
        %v897 = vadd.f32 %v873, %v895
        %s898 = sld [smem:[#allocation3 + $0x6d]]
        %v899 = vstv %s898
        %v900 = vmul.f32 %v805, %v899
        %902 = vrot.lane.b32.xlu0 %v900, 124
        %v903 = vpop.permute.xlu0 %902
        %v905 = vadd.f32 %v881, %v903
        %s906 = sld [smem:[#allocation3 + $0xb8]]
        %v907 = vstv %s906
        %v908 = vmul.f32 %v805, %v907
        %910 = vrot.lane.b32.xlu0 %v908, 124
        %v911 = vpop.permute.xlu0 %910
        %v913 = vadd.f32 %v889, %v911
        %v914 = vld [vmem:[%s695 + $0x2] sm:$0xff]
        %s915 = sld [smem:[#allocation3 + $0x23]]
        %v916 = vstv %s915
        %v917 = vmul.f32 %v914, %v916
        %v918 = vadd.f32 %v897, %v917
        %s919 = sld [smem:[#allocation3 + $0x6e]]
        %v920 = vstv %s919
        %v921 = vmul.f32 %v914, %v920
        %v922 = vadd.f32 %v905, %v921
        %s923 = sld [smem:[#allocation3 + $0xb9]]
        %v924 = vstv %s923
        %v925 = vmul.f32 %v914, %v924
        %v926 = vadd.f32 %v913, %v925
        %s927 = sld [smem:[#allocation3 + $0x24]]
        %v928 = vstv %s927
        %v929 = vmul.f32 %v914, %v928
        %931 = vrot.lane.b32.xlu0 %v929, 127
        %v932 = vpop.permute.xlu0 %931
        %v934 = vadd.f32 %v918, %v932
        %s935 = sld [smem:[#allocation3 + $0x6f]]
        %v936 = vstv %s935
        %v937 = vmul.f32 %v914, %v936
        %939 = vrot.lane.b32.xlu0 %v937, 127
        %v940 = vpop.permute.xlu0 %939
        %v942 = vadd.f32 %v922, %v940
        %s943 = sld [smem:[#allocation3 + $0xba]]
        %v944 = vstv %s943
        %v945 = vmul.f32 %v914, %v944
        %947 = vrot.lane.b32.xlu0 %v945, 127
        %v948 = vpop.permute.xlu0 %947
        %v950 = vadd.f32 %v926, %v948
        %s951 = sld [smem:[#allocation3 + $0x25]]
        %v952 = vstv %s951
        %v953 = vmul.f32 %v914, %v952
        %955 = vrot.lane.b32.xlu0 %v953, 126
        %v956 = vpop.permute.xlu0 %955
        %v958 = vadd.f32 %v934, %v956
        %s959 = sld [smem:[#allocation3 + $0x70]]
        %v960 = vstv %s959
        %v961 = vmul.f32 %v914, %v960
        %963 = vrot.lane.b32.xlu0 %v961, 126
        %v964 = vpop.permute.xlu0 %963
        %v966 = vadd.f32 %v942, %v964
        %s967 = sld [smem:[#allocation3 + $0xbb]]
        %v968 = vstv %s967
        %v969 = vmul.f32 %v914, %v968
        %971 = vrot.lane.b32.xlu0 %v969, 126
        %v972 = vpop.permute.xlu0 %971
        %v974 = vadd.f32 %v950, %v972
        %s975 = sld [smem:[#allocation3 + $0x26]]
        %v976 = vstv %s975
        %v977 = vmul.f32 %v914, %v976
        %979 = vrot.lane.b32.xlu0 %v977, 125
        %v980 = vpop.permute.xlu0 %979
        %v982 = vadd.f32 %v958, %v980
        %s983 = sld [smem:[#allocation3 + $0x71]]
        %v984 = vstv %s983
        %v985 = vmul.f32 %v914, %v984
        %987 = vrot.lane.b32.xlu0 %v985, 125
        %v988 = vpop.permute.xlu0 %987
        %v990 = vadd.f32 %v966, %v988
        %s991 = sld [smem:[#allocation3 + $0xbc]]
        %v992 = vstv %s991
        %v993 = vmul.f32 %v914, %v992
        %995 = vrot.lane.b32.xlu0 %v993, 125
        %v996 = vpop.permute.xlu0 %995
        %v998 = vadd.f32 %v974, %v996
        %s999 = sld [smem:[#allocation3 + $0x27]]
        %v1000 = vstv %s999
        %v1001 = vmul.f32 %v914, %v1000
        %1003 = vrot.lane.b32.xlu0 %v1001, 124
        %v1004 = vpop.permute.xlu0 %1003
        %v1006 = vadd.f32 %v982, %v1004
        %s1007 = sld [smem:[#allocation3 + $0x72]]
        %v1008 = vstv %s1007
        %v1009 = vmul.f32 %v914, %v1008
        %1011 = vrot.lane.b32.xlu0 %v1009, 124
        %v1012 = vpop.permute.xlu0 %1011
        %v1014 = vadd.f32 %v990, %v1012
        %s1015 = sld [smem:[#allocation3 + $0xbd]]
        %v1016 = vstv %s1015
        %v1017 = vmul.f32 %v914, %v1016
        %1019 = vrot.lane.b32.xlu0 %v1017, 124
        %v1020 = vpop.permute.xlu0 %1019
        %v1022 = vadd.f32 %v998, %v1020
        %v1023 = vld [vmem:[%s695 + $0x3] sm:$0xff]
        %s1024 = sld [smem:[#allocation3 + $0x28]]
        %v1025 = vstv %s1024
        %v1026 = vmul.f32 %v1023, %v1025
        %v1027 = vadd.f32 %v1006, %v1026
        %s1028 = sld [smem:[#allocation3 + $0x73]]
        %v1029 = vstv %s1028
        %v1030 = vmul.f32 %v1023, %v1029
        %v1031 = vadd.f32 %v1014, %v1030
        %s1032 = sld [smem:[#allocation3 + $0xbe]]
        %v1033 = vstv %s1032
        %v1034 = vmul.f32 %v1023, %v1033
        %v1035 = vadd.f32 %v1022, %v1034
        %s1036 = sld [smem:[#allocation3 + $0x29]]
        %v1037 = vstv %s1036
        %v1038 = vmul.f32 %v1023, %v1037
        %1040 = vrot.lane.b32.xlu0 %v1038, 127
        %v1041 = vpop.permute.xlu0 %1040
        %v1043 = vadd.f32 %v1027, %v1041
        %s1044 = sld [smem:[#allocation3 + $0x74]]
        %v1045 = vstv %s1044
        %v1046 = vmul.f32 %v1023, %v1045
        %1048 = vrot.lane.b32.xlu0 %v1046, 127
        %v1049 = vpop.permute.xlu0 %1048
        %v1051 = vadd.f32 %v1031, %v1049
        %s1052 = sld [smem:[#allocation3 + $0xbf]]
        %v1053 = vstv %s1052
        %v1054 = vmul.f32 %v1023, %v1053
        %1056 = vrot.lane.b32.xlu0 %v1054, 127
        %v1057 = vpop.permute.xlu0 %1056
        %v1059 = vadd.f32 %v1035, %v1057
        %s1060 = sld [smem:[#allocation3 + $0x2a]]
        %v1061 = vstv %s1060
        %v1062 = vmul.f32 %v1023, %v1061
        %1064 = vrot.lane.b32.xlu0 %v1062, 126
        %v1065 = vpop.permute.xlu0 %1064
        %v1067 = vadd.f32 %v1043, %v1065
        %s1068 = sld [smem:[#allocation3 + $0x75]]
        %v1069 = vstv %s1068
        %v1070 = vmul.f32 %v1023, %v1069
        %1072 = vrot.lane.b32.xlu0 %v1070, 126
        %v1073 = vpop.permute.xlu0 %1072
        %v1075 = vadd.f32 %v1051, %v1073
        %s1076 = sld [smem:[#allocation3 + $0xc0]]
        %v1077 = vstv %s1076
        %v1078 = vmul.f32 %v1023, %v1077
        %1080 = vrot.lane.b32.xlu0 %v1078, 126
        %v1081 = vpop.permute.xlu0 %1080
        %v1083 = vadd.f32 %v1059, %v1081
        %s1084 = sld [smem:[#allocation3 + $0x2b]]
        %v1085 = vstv %s1084
        %v1086 = vmul.f32 %v1023, %v1085
        %1088 = vrot.lane.b32.xlu0 %v1086, 125
        %v1089 = vpop.permute.xlu0 %1088
        %v1091 = vadd.f32 %v1067, %v1089
        %s1092 = sld [smem:[#allocation3 + $0x76]]
        %v1093 = vstv %s1092
        %v1094 = vmul.f32 %v1023, %v1093
        %1096 = vrot.lane.b32.xlu0 %v1094, 125
        %v1097 = vpop.permute.xlu0 %1096
        %v1099 = vadd.f32 %v1075, %v1097
        %s1100 = sld [smem:[#allocation3 + $0xc1]]
        %v1101 = vstv %s1100
        %v1102 = vmul.f32 %v1023, %v1101
        %1104 = vrot.lane.b32.xlu0 %v1102, 125
        %v1105 = vpop.permute.xlu0 %1104
        %v1107 = vadd.f32 %v1083, %v1105
        %s1108 = sld [smem:[#allocation3 + $0x2c]]
        %v1109 = vstv %s1108
        %v1110 = vmul.f32 %v1023, %v1109
        %1112 = vrot.lane.b32.xlu0 %v1110, 124
        %v1113 = vpop.permute.xlu0 %1112
        %v1115 = vadd.f32 %v1091, %v1113
        %s1116 = sld [smem:[#allocation3 + $0x77]]
        %v1117 = vstv %s1116
        %v1118 = vmul.f32 %v1023, %v1117
        %1120 = vrot.lane.b32.xlu0 %v1118, 124
        %v1121 = vpop.permute.xlu0 %1120
        %v1123 = vadd.f32 %v1099, %v1121
        %s1124 = sld [smem:[#allocation3 + $0xc2]]
        %v1125 = vstv %s1124
        %v1126 = vmul.f32 %v1023, %v1125
        %1128 = vrot.lane.b32.xlu0 %v1126, 124
        %v1129 = vpop.permute.xlu0 %1128
        %v1131 = vadd.f32 %v1107, %v1129
        %v1132 = vld [vmem:[%s695 + $0x4] sm:$0xff]
        %s1133 = sld [smem:[#allocation3 + $0x2d]]
        %v1134 = vstv %s1133
        %v1135 = vmul.f32 %v1132, %v1134
        %v1136 = vadd.f32 %v1115, %v1135
        %s1137 = sld [smem:[#allocation3 + $0x78]]
        %v1138 = vstv %s1137
        %v1139 = vmul.f32 %v1132, %v1138
        %v1140 = vadd.f32 %v1123, %v1139
        %s1141 = sld [smem:[#allocation3 + $0xc3]]
        %v1142 = vstv %s1141
        %v1143 = vmul.f32 %v1132, %v1142
        %v1144 = vadd.f32 %v1131, %v1143
        %s1145 = sld [smem:[#allocation3 + $0x2e]]
        %v1146 = vstv %s1145
        %v1147 = vmul.f32 %v1132, %v1146
        %1149 = vrot.lane.b32.xlu0 %v1147, 127
        %v1150 = vpop.permute.xlu0 %1149
        %v1152 = vadd.f32 %v1136, %v1150
        %s1153 = sld [smem:[#allocation3 + $0x79]]
        %v1154 = vstv %s1153
        %v1155 = vmul.f32 %v1132, %v1154
        %1157 = vrot.lane.b32.xlu0 %v1155, 127
        %v1158 = vpop.permute.xlu0 %1157
        %v1160 = vadd.f32 %v1140, %v1158
        %s1161 = sld [smem:[#allocation3 + $0xc4]]
        %v1162 = vstv %s1161
        %v1163 = vmul.f32 %v1132, %v1162
        %1165 = vrot.lane.b32.xlu0 %v1163, 127
        %v1166 = vpop.permute.xlu0 %1165
        %v1168 = vadd.f32 %v1144, %v1166
        %s1169 = sld [smem:[#allocation3 + $0x2f]]
        %v1170 = vstv %s1169
        %v1171 = vmul.f32 %v1132, %v1170
        %1173 = vrot.lane.b32.xlu0 %v1171, 126
        %v1174 = vpop.permute.xlu0 %1173
        %v1176 = vadd.f32 %v1152, %v1174
        %s1177 = sld [smem:[#allocation3 + $0x7a]]
        %v1178 = vstv %s1177
        %v1179 = vmul.f32 %v1132, %v1178
        %1181 = vrot.lane.b32.xlu0 %v1179, 126
        %v1182 = vpop.permute.xlu0 %1181
        %v1184 = vadd.f32 %v1160, %v1182
        %s1185 = sld [smem:[#allocation3 + $0xc5]]
        %v1186 = vstv %s1185
        %v1187 = vmul.f32 %v1132, %v1186
        %1189 = vrot.lane.b32.xlu0 %v1187, 126
        %v1190 = vpop.permute.xlu0 %1189
        %v1192 = vadd.f32 %v1168, %v1190
        %s1193 = sld [smem:[#allocation3 + $0x30]]
        %v1194 = vstv %s1193
        %v1195 = vmul.f32 %v1132, %v1194
        %1197 = vrot.lane.b32.xlu0 %v1195, 125
        %v1198 = vpop.permute.xlu0 %1197
        %v1200 = vadd.f32 %v1176, %v1198
        %s1201 = sld [smem:[#allocation3 + $0x7b]]
        %v1202 = vstv %s1201
        %v1203 = vmul.f32 %v1132, %v1202
        %1205 = vrot.lane.b32.xlu0 %v1203, 125
        %v1206 = vpop.permute.xlu0 %1205
        %v1208 = vadd.f32 %v1184, %v1206
        %s1209 = sld [smem:[#allocation3 + $0xc6]]
        %v1210 = vstv %s1209
        %v1211 = vmul.f32 %v1132, %v1210
        %1213 = vrot.lane.b32.xlu0 %v1211, 125
        %v1214 = vpop.permute.xlu0 %1213
        %v1216 = vadd.f32 %v1192, %v1214
        %s1217 = sld [smem:[#allocation3 + $0x31]]
        %v1218 = vstv %s1217
        %v1219 = vmul.f32 %v1132, %v1218
        %1221 = vrot.lane.b32.xlu0 %v1219, 124
        %v1222 = vpop.permute.xlu0 %1221
        %v1224 = vadd.f32 %v1200, %v1222
        %s1225 = sld [smem:[#allocation3 + $0x7c]]
        %v1226 = vstv %s1225
        %v1227 = vmul.f32 %v1132, %v1226
        %1229 = vrot.lane.b32.xlu0 %v1227, 124
        %v1230 = vpop.permute.xlu0 %1229
        %v1232 = vadd.f32 %v1208, %v1230
        %s1233 = sld [smem:[#allocation3 + $0xc7]]
        %v1234 = vstv %s1233
        %v1235 = vmul.f32 %v1132, %v1234
        %1237 = vrot.lane.b32.xlu0 %v1235, 124
        %v1238 = vpop.permute.xlu0 %1237
        %v1240 = vadd.f32 %v1216, %v1238
        %s1241 = scalar_lea.vmem %s149, 32
        %v1242 = vld [vmem:[%s1241] sm:$0xff]
        %s1243 = sld [smem:[#allocation3 + $0x32]]
        %v1244 = vstv %s1243
        %v1245 = vmul.f32 %v1242, %v1244
        %v1246 = vadd.f32 %v1224, %v1245
        %s1247 = sld [smem:[#allocation3 + $0x7d]]
        %v1248 = vstv %s1247
        %v1249 = vmul.f32 %v1242, %v1248
        %v1250 = vadd.f32 %v1232, %v1249
        %s1251 = sld [smem:[#allocation3 + $0xc8]]
        %v1252 = vstv %s1251
        %v1253 = vmul.f32 %v1242, %v1252
        %v1254 = vadd.f32 %v1240, %v1253
        %s1255 = sld [smem:[#allocation3 + $0x33]]
        %v1256 = vstv %s1255
        %v1257 = vmul.f32 %v1242, %v1256
        %1259 = vrot.lane.b32.xlu0 %v1257, 127
        %v1260 = vpop.permute.xlu0 %1259
        %v1262 = vadd.f32 %v1246, %v1260
        %s1263 = sld [smem:[#allocation3 + $0x7e]]
        %v1264 = vstv %s1263
        %v1265 = vmul.f32 %v1242, %v1264
        %1267 = vrot.lane.b32.xlu0 %v1265, 127
        %v1268 = vpop.permute.xlu0 %1267
        %v1270 = vadd.f32 %v1250, %v1268
        %s1271 = sld [smem:[#allocation3 + $0xc9]]
        %v1272 = vstv %s1271
        %v1273 = vmul.f32 %v1242, %v1272
        %1275 = vrot.lane.b32.xlu0 %v1273, 127
        %v1276 = vpop.permute.xlu0 %1275
        %v1278 = vadd.f32 %v1254, %v1276
        %s1279 = sld [smem:[#allocation3 + $0x34]]
        %v1280 = vstv %s1279
        %v1281 = vmul.f32 %v1242, %v1280
        %1283 = vrot.lane.b32.xlu0 %v1281, 126
        %v1284 = vpop.permute.xlu0 %1283
        %v1286 = vadd.f32 %v1262, %v1284
        %s1287 = sld [smem:[#allocation3 + $0x7f]]
        %v1288 = vstv %s1287
        %v1289 = vmul.f32 %v1242, %v1288
        %1291 = vrot.lane.b32.xlu0 %v1289, 126
        %v1292 = vpop.permute.xlu0 %1291
        %v1294 = vadd.f32 %v1270, %v1292
        %s1295 = sld [smem:[#allocation3 + $0xca]]
        %v1296 = vstv %s1295
        %v1297 = vmul.f32 %v1242, %v1296
        %1299 = vrot.lane.b32.xlu0 %v1297, 126
        %v1300 = vpop.permute.xlu0 %1299
        %v1302 = vadd.f32 %v1278, %v1300
        %s1303 = sld [smem:[#allocation3 + $0x35]]
        %v1304 = vstv %s1303
        %v1305 = vmul.f32 %v1242, %v1304
        %1307 = vrot.lane.b32.xlu0 %v1305, 125
        %v1308 = vpop.permute.xlu0 %1307
        %v1310 = vadd.f32 %v1286, %v1308
        %s1311 = sld [smem:[#allocation3 + $0x80]]
        %v1312 = vstv %s1311
        %v1313 = vmul.f32 %v1242, %v1312
        %1315 = vrot.lane.b32.xlu0 %v1313, 125
        %v1316 = vpop.permute.xlu0 %1315
        %v1318 = vadd.f32 %v1294, %v1316
        %s1319 = sld [smem:[#allocation3 + $0xcb]]
        %v1320 = vstv %s1319
        %v1321 = vmul.f32 %v1242, %v1320
        %1323 = vrot.lane.b32.xlu0 %v1321, 125
        %v1324 = vpop.permute.xlu0 %1323
        %v1326 = vadd.f32 %v1302, %v1324
        %s1327 = sld [smem:[#allocation3 + $0x36]]
        %v1328 = vstv %s1327
        %v1329 = vmul.f32 %v1242, %v1328
        %1331 = vrot.lane.b32.xlu0 %v1329, 124
        %v1332 = vpop.permute.xlu0 %1331
        %v1334 = vadd.f32 %v1310, %v1332
        %s1335 = sld [smem:[#allocation3 + $0x81]]
        %v1336 = vstv %s1335
        %v1337 = vmul.f32 %v1242, %v1336
        %1339 = vrot.lane.b32.xlu0 %v1337, 124
        %v1340 = vpop.permute.xlu0 %1339
        %v1342 = vadd.f32 %v1318, %v1340
        %s1343 = sld [smem:[#allocation3 + $0xcc]]
        %v1344 = vstv %s1343
        %v1345 = vmul.f32 %v1242, %v1344
        %1347 = vrot.lane.b32.xlu0 %v1345, 124
        %v1348 = vpop.permute.xlu0 %1347
        %v1350 = vadd.f32 %v1326, %v1348
        %v1351 = vld [vmem:[%s1241 + $0x1] sm:$0xff]
        %s1352 = sld [smem:[#allocation3 + $0x37]]
        %v1353 = vstv %s1352
        %v1354 = vmul.f32 %v1351, %v1353
        %v1355 = vadd.f32 %v1334, %v1354
        %s1356 = sld [smem:[#allocation3 + $0x82]]
        %v1357 = vstv %s1356
        %v1358 = vmul.f32 %v1351, %v1357
        %v1359 = vadd.f32 %v1342, %v1358
        %s1360 = sld [smem:[#allocation3 + $0xcd]]
        %v1361 = vstv %s1360
        %v1362 = vmul.f32 %v1351, %v1361
        %v1363 = vadd.f32 %v1350, %v1362
        %s1364 = sld [smem:[#allocation3 + $0x38]]
        %v1365 = vstv %s1364
        %v1366 = vmul.f32 %v1351, %v1365
        %1368 = vrot.lane.b32.xlu0 %v1366, 127
        %v1369 = vpop.permute.xlu0 %1368
        %v1371 = vadd.f32 %v1355, %v1369
        %s1372 = sld [smem:[#allocation3 + $0x83]]
        %v1373 = vstv %s1372
        %v1374 = vmul.f32 %v1351, %v1373
        %1376 = vrot.lane.b32.xlu0 %v1374, 127
        %v1377 = vpop.permute.xlu0 %1376
        %v1379 = vadd.f32 %v1359, %v1377
        %s1380 = sld [smem:[#allocation3 + $0xce]]
        %v1381 = vstv %s1380
        %v1382 = vmul.f32 %v1351, %v1381
        %1384 = vrot.lane.b32.xlu0 %v1382, 127
        %v1385 = vpop.permute.xlu0 %1384
        %v1387 = vadd.f32 %v1363, %v1385
        %s1388 = sld [smem:[#allocation3 + $0x39]]
        %v1389 = vstv %s1388
        %v1390 = vmul.f32 %v1351, %v1389
        %1392 = vrot.lane.b32.xlu0 %v1390, 126
        %v1393 = vpop.permute.xlu0 %1392
        %v1395 = vadd.f32 %v1371, %v1393
        %s1396 = sld [smem:[#allocation3 + $0x84]]
        %v1397 = vstv %s1396
        %v1398 = vmul.f32 %v1351, %v1397
        %1400 = vrot.lane.b32.xlu0 %v1398, 126
        %v1401 = vpop.permute.xlu0 %1400
        %v1403 = vadd.f32 %v1379, %v1401
        %s1404 = sld [smem:[#allocation3 + $0xcf]]
        %v1405 = vstv %s1404
        %v1406 = vmul.f32 %v1351, %v1405
        %1408 = vrot.lane.b32.xlu0 %v1406, 126
        %v1409 = vpop.permute.xlu0 %1408
        %v1411 = vadd.f32 %v1387, %v1409
        %s1412 = sld [smem:[#allocation3 + $0x3a]]
        %v1413 = vstv %s1412
        %v1414 = vmul.f32 %v1351, %v1413
        %1416 = vrot.lane.b32.xlu0 %v1414, 125
        %v1417 = vpop.permute.xlu0 %1416
        %v1419 = vadd.f32 %v1395, %v1417
        %s1420 = sld [smem:[#allocation3 + $0x85]]
        %v1421 = vstv %s1420
        %v1422 = vmul.f32 %v1351, %v1421
        %1424 = vrot.lane.b32.xlu0 %v1422, 125
        %v1425 = vpop.permute.xlu0 %1424
        %v1427 = vadd.f32 %v1403, %v1425
        %s1428 = sld [smem:[#allocation3 + $0xd0]]
        %v1429 = vstv %s1428
        %v1430 = vmul.f32 %v1351, %v1429
        %1432 = vrot.lane.b32.xlu0 %v1430, 125
        %v1433 = vpop.permute.xlu0 %1432
        %v1435 = vadd.f32 %v1411, %v1433
        %s1436 = sld [smem:[#allocation3 + $0x3b]]
        %v1437 = vstv %s1436
        %v1438 = vmul.f32 %v1351, %v1437
        %1440 = vrot.lane.b32.xlu0 %v1438, 124
        %v1441 = vpop.permute.xlu0 %1440
        %v1443 = vadd.f32 %v1419, %v1441
        %s1444 = sld [smem:[#allocation3 + $0x86]]
        %v1445 = vstv %s1444
        %v1446 = vmul.f32 %v1351, %v1445
        %1448 = vrot.lane.b32.xlu0 %v1446, 124
        %v1449 = vpop.permute.xlu0 %1448
        %v1451 = vadd.f32 %v1427, %v1449
        %s1452 = sld [smem:[#allocation3 + $0xd1]]
        %v1453 = vstv %s1452
        %v1454 = vmul.f32 %v1351, %v1453
        %1456 = vrot.lane.b32.xlu0 %v1454, 124
        %v1457 = vpop.permute.xlu0 %1456
        %v1459 = vadd.f32 %v1435, %v1457
        %v1460 = vld [vmem:[%s1241 + $0x2] sm:$0xff]
        %s1461 = sld [smem:[#allocation3 + $0x3c]]
        %v1462 = vstv %s1461
        %v1463 = vmul.f32 %v1460, %v1462
        %v1464 = vadd.f32 %v1443, %v1463
        %s1465 = sld [smem:[#allocation3 + $0x87]]
        %v1466 = vstv %s1465
        %v1467 = vmul.f32 %v1460, %v1466
        %v1468 = vadd.f32 %v1451, %v1467
        %s1469 = sld [smem:[#allocation3 + $0xd2]]
        %v1470 = vstv %s1469
        %v1471 = vmul.f32 %v1460, %v1470
        %v1472 = vadd.f32 %v1459, %v1471
        %s1473 = sld [smem:[#allocation3 + $0x3d]]
        %v1474 = vstv %s1473
        %v1475 = vmul.f32 %v1460, %v1474
        %1477 = vrot.lane.b32.xlu0 %v1475, 127
        %v1478 = vpop.permute.xlu0 %1477
        %v1480 = vadd.f32 %v1464, %v1478
        %s1481 = sld [smem:[#allocation3 + $0x88]]
        %v1482 = vstv %s1481
        %v1483 = vmul.f32 %v1460, %v1482
        %1485 = vrot.lane.b32.xlu0 %v1483, 127
        %v1486 = vpop.permute.xlu0 %1485
        %v1488 = vadd.f32 %v1468, %v1486
        %s1489 = sld [smem:[#allocation3 + $0xd3]]
        %v1490 = vstv %s1489
        %v1491 = vmul.f32 %v1460, %v1490
        %1493 = vrot.lane.b32.xlu0 %v1491, 127
        %v1494 = vpop.permute.xlu0 %1493
        %v1496 = vadd.f32 %v1472, %v1494
        %s1497 = sld [smem:[#allocation3 + $0x3e]]
        %v1498 = vstv %s1497
        %v1499 = vmul.f32 %v1460, %v1498
        %1501 = vrot.lane.b32.xlu0 %v1499, 126
        %v1502 = vpop.permute.xlu0 %1501
        %v1504 = vadd.f32 %v1480, %v1502
        %s1505 = sld [smem:[#allocation3 + $0x89]]
        %v1506 = vstv %s1505
        %v1507 = vmul.f32 %v1460, %v1506
        %1509 = vrot.lane.b32.xlu0 %v1507, 126
        %v1510 = vpop.permute.xlu0 %1509
        %v1512 = vadd.f32 %v1488, %v1510
        %s1513 = sld [smem:[#allocation3 + $0xd4]]
        %v1514 = vstv %s1513
        %v1515 = vmul.f32 %v1460, %v1514
        %1517 = vrot.lane.b32.xlu0 %v1515, 126
        %v1518 = vpop.permute.xlu0 %1517
        %v1520 = vadd.f32 %v1496, %v1518
        %s1521 = sld [smem:[#allocation3 + $0x3f]]
        %v1522 = vstv %s1521
        %v1523 = vmul.f32 %v1460, %v1522
        %1525 = vrot.lane.b32.xlu0 %v1523, 125
        %v1526 = vpop.permute.xlu0 %1525
        %v1528 = vadd.f32 %v1504, %v1526
        %s1529 = sld [smem:[#allocation3 + $0x8a]]
        %v1530 = vstv %s1529
        %v1531 = vmul.f32 %v1460, %v1530
        %1533 = vrot.lane.b32.xlu0 %v1531, 125
        %v1534 = vpop.permute.xlu0 %1533
        %v1536 = vadd.f32 %v1512, %v1534
        %s1537 = sld [smem:[#allocation3 + $0xd5]]
        %v1538 = vstv %s1537
        %v1539 = vmul.f32 %v1460, %v1538
        %1541 = vrot.lane.b32.xlu0 %v1539, 125
        %v1542 = vpop.permute.xlu0 %1541
        %v1544 = vadd.f32 %v1520, %v1542
        %s1545 = sld [smem:[#allocation3 + $0x40]]
        %v1546 = vstv %s1545
        %v1547 = vmul.f32 %v1460, %v1546
        %1549 = vrot.lane.b32.xlu0 %v1547, 124
        %v1550 = vpop.permute.xlu0 %1549
        %v1552 = vadd.f32 %v1528, %v1550
        %s1553 = sld [smem:[#allocation3 + $0x8b]]
        %v1554 = vstv %s1553
        %v1555 = vmul.f32 %v1460, %v1554
        %1557 = vrot.lane.b32.xlu0 %v1555, 124
        %v1558 = vpop.permute.xlu0 %1557
        %v1560 = vadd.f32 %v1536, %v1558
        %s1561 = sld [smem:[#allocation3 + $0xd6]]
        %v1562 = vstv %s1561
        %v1563 = vmul.f32 %v1460, %v1562
        %1565 = vrot.lane.b32.xlu0 %v1563, 124
        %v1566 = vpop.permute.xlu0 %1565
        %v1568 = vadd.f32 %v1544, %v1566
        %v1569 = vld [vmem:[%s1241 + $0x3] sm:$0xff]
        %s1570 = sld [smem:[#allocation3 + $0x41]]
        %v1571 = vstv %s1570
        %v1572 = vmul.f32 %v1569, %v1571
        %v1573 = vadd.f32 %v1552, %v1572
        %s1574 = sld [smem:[#allocation3 + $0x8c]]
        %v1575 = vstv %s1574
        %v1576 = vmul.f32 %v1569, %v1575
        %v1577 = vadd.f32 %v1560, %v1576
        %s1578 = sld [smem:[#allocation3 + $0xd7]]
        %v1579 = vstv %s1578
        %v1580 = vmul.f32 %v1569, %v1579
        %v1581 = vadd.f32 %v1568, %v1580
        %s1582 = sld [smem:[#allocation3 + $0x42]]
        %v1583 = vstv %s1582
        %v1584 = vmul.f32 %v1569, %v1583
        %1586 = vrot.lane.b32.xlu0 %v1584, 127
        %v1587 = vpop.permute.xlu0 %1586
        %v1589 = vadd.f32 %v1573, %v1587
        %s1590 = sld [smem:[#allocation3 + $0x8d]]
        %v1591 = vstv %s1590
        %v1592 = vmul.f32 %v1569, %v1591
        %1594 = vrot.lane.b32.xlu0 %v1592, 127
        %v1595 = vpop.permute.xlu0 %1594
        %v1597 = vadd.f32 %v1577, %v1595
        %s1598 = sld [smem:[#allocation3 + $0xd8]]
        %v1599 = vstv %s1598
        %v1600 = vmul.f32 %v1569, %v1599
        %1602 = vrot.lane.b32.xlu0 %v1600, 127
        %v1603 = vpop.permute.xlu0 %1602
        %v1605 = vadd.f32 %v1581, %v1603
        %s1606 = sld [smem:[#allocation3 + $0x43]]
        %v1607 = vstv %s1606
        %v1608 = vmul.f32 %v1569, %v1607
        %1610 = vrot.lane.b32.xlu0 %v1608, 126
        %v1611 = vpop.permute.xlu0 %1610
        %v1613 = vadd.f32 %v1589, %v1611
        %s1614 = sld [smem:[#allocation3 + $0x8e]]
        %v1615 = vstv %s1614
        %v1616 = vmul.f32 %v1569, %v1615
        %1618 = vrot.lane.b32.xlu0 %v1616, 126
        %v1619 = vpop.permute.xlu0 %1618
        %v1621 = vadd.f32 %v1597, %v1619
        %s1622 = sld [smem:[#allocation3 + $0xd9]]
        %v1623 = vstv %s1622
        %v1624 = vmul.f32 %v1569, %v1623
        %1626 = vrot.lane.b32.xlu0 %v1624, 126
        %v1627 = vpop.permute.xlu0 %1626
        %v1629 = vadd.f32 %v1605, %v1627
        %s1630 = sld [smem:[#allocation3 + $0x44]]
        %v1631 = vstv %s1630
        %v1632 = vmul.f32 %v1569, %v1631
        %1634 = vrot.lane.b32.xlu0 %v1632, 125
        %v1635 = vpop.permute.xlu0 %1634
        %v1637 = vadd.f32 %v1613, %v1635
        %s1638 = sld [smem:[#allocation3 + $0x8f]]
        %v1639 = vstv %s1638
        %v1640 = vmul.f32 %v1569, %v1639
        %1642 = vrot.lane.b32.xlu0 %v1640, 125
        %v1643 = vpop.permute.xlu0 %1642
        %v1645 = vadd.f32 %v1621, %v1643
        %s1646 = sld [smem:[#allocation3 + $0xda]]
        %v1647 = vstv %s1646
        %v1648 = vmul.f32 %v1569, %v1647
        %1650 = vrot.lane.b32.xlu0 %v1648, 125
        %v1651 = vpop.permute.xlu0 %1650
        %v1653 = vadd.f32 %v1629, %v1651
        %s1654 = sld [smem:[#allocation3 + $0x45]]
        %v1655 = vstv %s1654
        %v1656 = vmul.f32 %v1569, %v1655
        %1658 = vrot.lane.b32.xlu0 %v1656, 124
        %v1659 = vpop.permute.xlu0 %1658
        %v1661 = vadd.f32 %v1637, %v1659
        %s1662 = sld [smem:[#allocation3 + $0x90]]
        %v1663 = vstv %s1662
        %v1664 = vmul.f32 %v1569, %v1663
        %1666 = vrot.lane.b32.xlu0 %v1664, 124
        %v1667 = vpop.permute.xlu0 %1666
        %v1669 = vadd.f32 %v1645, %v1667
        %s1670 = sld [smem:[#allocation3 + $0xdb]]
        %v1671 = vstv %s1670
        %v1672 = vmul.f32 %v1569, %v1671
        %1674 = vrot.lane.b32.xlu0 %v1672, 124
        %v1675 = vpop.permute.xlu0 %1674
        %v1677 = vadd.f32 %v1653, %v1675
        %v1678 = vld [vmem:[%s1241 + $0x4] sm:$0xff]
        %s1679 = sld [smem:[#allocation3 + $0x46]]
        %v1680 = vstv %s1679
        %v1681 = vmul.f32 %v1678, %v1680
        %v1682 = vadd.f32 %v1661, %v1681
        %s1683 = sld [smem:[#allocation3 + $0x91]]
        %v1684 = vstv %s1683
        %v1685 = vmul.f32 %v1678, %v1684
        %v1686 = vadd.f32 %v1669, %v1685
        %s1687 = sld [smem:[#allocation3 + $0xdc]]
        %v1688 = vstv %s1687
        %v1689 = vmul.f32 %v1678, %v1688
        %v1690 = vadd.f32 %v1677, %v1689
        %s1691 = sld [smem:[#allocation3 + $0x47]]
        %v1692 = vstv %s1691
        %v1693 = vmul.f32 %v1678, %v1692
        %1695 = vrot.lane.b32.xlu0 %v1693, 127
        %v1696 = vpop.permute.xlu0 %1695
        %v1698 = vadd.f32 %v1682, %v1696
        %s1699 = sld [smem:[#allocation3 + $0x92]]
        %v1700 = vstv %s1699
        %v1701 = vmul.f32 %v1678, %v1700
        %1703 = vrot.lane.b32.xlu0 %v1701, 127
        %v1704 = vpop.permute.xlu0 %1703
        %v1706 = vadd.f32 %v1686, %v1704
        %s1707 = sld [smem:[#allocation3 + $0xdd]]
        %v1708 = vstv %s1707
        %v1709 = vmul.f32 %v1678, %v1708
        %1711 = vrot.lane.b32.xlu0 %v1709, 127
        %v1712 = vpop.permute.xlu0 %1711
        %v1714 = vadd.f32 %v1690, %v1712
        %s1715 = sld [smem:[#allocation3 + $0x48]]
        %v1716 = vstv %s1715
        %v1717 = vmul.f32 %v1678, %v1716
        %1719 = vrot.lane.b32.xlu0 %v1717, 126
        %v1720 = vpop.permute.xlu0 %1719
        %v1722 = vadd.f32 %v1698, %v1720
        %s1723 = sld [smem:[#allocation3 + $0x93]]
        %v1724 = vstv %s1723
        %v1725 = vmul.f32 %v1678, %v1724
        %1727 = vrot.lane.b32.xlu0 %v1725, 126
        %v1728 = vpop.permute.xlu0 %1727
        %v1730 = vadd.f32 %v1706, %v1728
        %s1731 = sld [smem:[#allocation3 + $0xde]]
        %v1732 = vstv %s1731
        %v1733 = vmul.f32 %v1678, %v1732
        %1735 = vrot.lane.b32.xlu0 %v1733, 126
        %v1736 = vpop.permute.xlu0 %1735
        %v1738 = vadd.f32 %v1714, %v1736
        %s1739 = sld [smem:[#allocation3 + $0x49]]
        %v1740 = vstv %s1739
        %v1741 = vmul.f32 %v1678, %v1740
        %1743 = vrot.lane.b32.xlu0 %v1741, 125
        %v1744 = vpop.permute.xlu0 %1743
        %v1746 = vadd.f32 %v1722, %v1744
        %s1747 = sld [smem:[#allocation3 + $0x94]]
        %v1748 = vstv %s1747
        %v1749 = vmul.f32 %v1678, %v1748
        %1751 = vrot.lane.b32.xlu0 %v1749, 125
        %v1752 = vpop.permute.xlu0 %1751
        %v1754 = vadd.f32 %v1730, %v1752
        %s1755 = sld [smem:[#allocation3 + $0xdf]]
        %v1756 = vstv %s1755
        %v1757 = vmul.f32 %v1678, %v1756
        %1759 = vrot.lane.b32.xlu0 %v1757, 125
        %v1760 = vpop.permute.xlu0 %1759
        %v1762 = vadd.f32 %v1738, %v1760
        %s1763 = sld [smem:[#allocation3 + $0x4a]]
        %v1764 = vstv %s1763
        %v1765 = vmul.f32 %v1678, %v1764
        %1767 = vrot.lane.b32.xlu0 %v1765, 124
        %v1768 = vpop.permute.xlu0 %1767
        %v1770 = vadd.f32 %v1746, %v1768
        %s1771 = sld [smem:[#allocation3 + $0x95]]
        %v1772 = vstv %s1771
        %v1773 = vmul.f32 %v1678, %v1772
        %1775 = vrot.lane.b32.xlu0 %v1773, 124
        %v1776 = vpop.permute.xlu0 %1775
        %v1778 = vadd.f32 %v1754, %v1776
        %s1779 = sld [smem:[#allocation3 + $0xe0]]
        %v1780 = vstv %s1779
        %v1781 = vmul.f32 %v1678, %v1780
        %1783 = vrot.lane.b32.xlu0 %v1781, 124
        %v1784 = vpop.permute.xlu0 %1783
        %v1786 = vadd.f32 %v1762, %v1784
        %vm1787 = vcmask 130048
        %1788 = vst.msk [vmem:[%s140] sm:$0xff] %vm1787, %v1770
        %s1789 = scalar_lea.vmem %s140, 8 [#allocation4]
        %1790 = vst.msk [vmem:[%s1789] sm:$0xff] %vm1787, %v1778
        %s1791 = scalar_lea.vmem %s140, 16 [#allocation4]
        %1792 = vst.msk [vmem:[%s1791] sm:$0xff] %vm1787, %v1786
        %v1793 = vld [vmem:[%s149 + $0x2] sm:$0xff]
        %v1794 = vld [vmem:[%s149 + $0x12] sm:$0xff]
        %v1795 = vld [vmem:[%s149 + $0x22] sm:$0xff]
        %1799 = vrot.lane.b32.xlu0 %v1793, 126
        %v1800 = vpop.permute.xlu0 %1799
        %1801 = vrot.lane.b32.xlu0 %v1794, 126
        %v1802 = vpop.permute.xlu0 %1801
        %1803 = vrot.lane.b32.xlu0 %v1795, 126
        %v1804 = vpop.permute.xlu0 %1803
        %s1808 = scalar_lea.vmem %s140, 24 [#allocation4]
        %1809 = vst.msk [vmem:[%s1808] sm:$0xff] %vm1787, %v1800
        %1810 = vst.msk [vmem:[%s1808 + $0x8] sm:$0xff] %vm1787, %v1802
        %1811 = vst.msk [vmem:[%s1808 + $0x10] sm:$0xff] %vm1787, %v1804
        %s1812 = sand.u32 %s72, 1
        %s1813 = scalar_lea.sflag [#allocation5], %s1812
        %s1814 = sand.u32 %s72, 1
        %s1815 = smul.addr %s1814, 48
        %s1816 = scalar_lea.vmem [#allocation4], %s1815
        // Predicated region
        $region25: #{tpu_custom_call.1} parent=23 // pred_check
          %p1817 = pneg %p82
        $region26: #{tpu_custom_call.1} parent=23 // pred_check_branch
          %1819 = sbr.rel (%p1817) target = $region28
        $region27: #{tpu_custom_call.1} parent=23 // pred_region
          %s1821 = ssub.s32 768, 768
          %1822 = vsyncadd %s1813, %s1821
          %s1823 = smul.addr %s26, 12
          %s1824 = sadd.s32 %s27, %s1823
          %s1825 = smul.addr %s1824, 128
          %s1826 = scalar_lea.hbm %s2, %s1825
          %s1827 = sshll.u32 %s1816, 4
          %s1828 = int_to_ptr.vmem [resolvable:$true] %s1827
          %1833 = dma.vmem_to_hbm [thread:$0]  %s1828, 768, %s1826, %s1813, 128, 256, 8
        $region28: #{tpu_custom_call.1} parent=23 // pred_fallthru
          _
      $region24: #{tpu_custom_call.1} parent=5 // pred_fallthru
        _
      %p1834 = scmp.le.s32.totalorder 2, %s17
      // Predicated region
      $region29: #{tpu_custom_call.1} parent=5 // pred_check
        %p1835 = pneg %p1834
      $region30: #{tpu_custom_call.1} parent=5 // pred_check_branch
        %1837 = sbr.rel (%p1835) target = $region32
      $region31: #{tpu_custom_call.1} parent=5 // pred_region
        %s1838 = ssub.s32 %s17, 2
        // Predicated region
        $region33: #{tpu_custom_call.1} parent=31 // pred_check
          %p1839 = pneg %p88
        $region34: #{tpu_custom_call.1} parent=31 // pred_check_branch
          %1841 = sbr.rel (%p1839) target = $region36
        $region35: #{tpu_custom_call.1} parent=31 // pred_region
          %s1842 = sand.u32 %s73, 1
          %s1843 = scalar_lea.sflag [#allocation5], %s1842
          %s1844 = sand.u32 %s73, 1
          %s1845 = smul.addr %s1844, 48
          %s1846 = scalar_lea.vmem [#allocation4], %s1845
          %1847 = dma.done %s1843, 768
        $region36: #{tpu_custom_call.1} parent=31 // pred_fallthru
          _
      $region32: #{tpu_custom_call.1} parent=5 // pred_fallthru
        _
    $region6: #{tpu_custom_call.1} parent=1 // loop_footer
      %s21 = sadd.s32 1, %s17
    $region7: #{tpu_custom_call.1} parent=1 // loop_footer_branch
      %16 = sbr.rel target = $region3
    $region8: #{tpu_custom_call.1} parent=1 // loop_exit
      _
    %1848 = vsyncpa [#allocation5], 1
    %s1849 = scalar_lea.sflag [#allocation5], 1
    %1850 = vsyncpa %s1849, 1

</llo_original>
